<compile_context>
chip_gen: v5e
topology: v5e:2x2
jax: 0.10.0
libtpu: 0.0.40
codegen_flags: <defaults>
</compile_context>

<pallas_src>
import math
import functools

import jax
import jax.numpy as jnp
from jax.experimental import pallas as pl
from jax.experimental.pallas import tpu as pltpu

LANE = 128  # lane width / class-dim padding target


def _round_up(a, b):
    return (a + b - 1) // b * b


def _pick_block(npad, pref):
    """Largest multiple of 128 <= pref that divides npad (npad % 128 == 0)."""
    b = max(min(pref, npad), LANE)
    while npad % b:
        b -= LANE
    return b


# ------------------------------------------------------------------
# Kernel 1: row-tiled fused 2-layer MLP   z = relu(x@W1 + b1) @ W2p + b2p
# (W2/b2 are pre-padded to 128 output lanes; padded columns are exactly 0.)
# ------------------------------------------------------------------
def _mlp_kernel(x_ref, w1_ref, b1_ref, w2_ref, b2_ref, o_ref):
    h = jnp.dot(x_ref[...], w1_ref[...], preferred_element_type=jnp.float32)
    h = jnp.maximum(h + b1_ref[...], 0.0)
    z = jnp.dot(h, w2_ref[...], preferred_element_type=jnp.float32)
    o_ref[...] = z + b2_ref[...]


def mlp_forward(x_pad, w1, b1, w2p, b2p, *, block_rows):
    npad, f = x_pad.shape
    hdim = w1.shape[1]
    cp = w2p.shape[1]
    return pl.pallas_call(
        _mlp_kernel,
        out_shape=jax.ShapeDtypeStruct((npad, cp), jnp.float32),
        grid_spec=pltpu.PrefetchScalarGridSpec(
            num_scalar_prefetch=0,
            grid=(npad // block_rows,),
            in_specs=[
                pl.BlockSpec((block_rows, f), lambda i: (i, 0)),
                pl.BlockSpec((f, hdim), lambda i: (0, 0)),      # resident
                pl.BlockSpec((1, hdim), lambda i: (0, 0)),      # resident
                pl.BlockSpec((hdim, cp), lambda i: (0, 0)),     # resident
                pl.BlockSpec((1, cp), lambda i: (0, 0)),        # resident
            ],
            out_specs=pl.BlockSpec((block_rows, cp), lambda i: (i, 0)),
        ),
        compiler_params=pltpu.CompilerParams(
            dimension_semantics=("parallel",),
            vmem_limit_bytes=32 * 1024 * 1024,
        ),
    )(x_pad, w1, b1, w2p, b2p)


# ------------------------------------------------------------------
# Kernel 2: one fused Bernstein sweep, tiled over (row blocks, L col blocks).
#   state = [V | S]  (lane-concatenated, each cp lanes wide)
#   acc   = L @ state_cols  (bf16 MXU, fp32 accumulate in VMEM scratch)
#   epilogue (last column block):
#     V_new = 2 * V_old - (L V)
#     S_new = (L S) + coef[K-step] * V_new          (step > 1)
#     S_new = coef[K] * (L V) + coef[K-1] * V_new   (step == 1; S_0 = c_K z)
#   final sweep: fused masked log_softmax, only the class half is written.
# ------------------------------------------------------------------
def _prop_kernel(coef_ref, l_ref, xc_ref, xr_ref, o_ref, acc_ref, *,
                 cp, K, step, first, final, n_classes):
    jc = pl.program_id(1)

    @pl.when(jc == 0)
    def _():
        acc_ref[...] = jnp.zeros_like(acc_ref)

    acc_ref[...] += jnp.dot(l_ref[...], xc_ref[...].astype(jnp.bfloat16),
                            preferred_element_type=jnp.float32)

    @pl.when(jc == pl.num_programs(1) - 1)
    def _():
        acc = acc_ref[...]
        if first:
            lv = acc                              # L @ V_0
            v_old = xr_ref[...]
            v_new = 2.0 * v_old - lv
            s_new = coef_ref[K] * lv + coef_ref[K - 1] * v_new
        else:
            lv = acc[:, :cp]                      # L @ V_{j-1}
            ls = acc[:, cp:]                      # L @ S_{j-1}
            v_old = xr_ref[:, :cp]
            v_new = 2.0 * v_old - lv
            s_new = ls + coef_ref[K - step] * v_new
        if final:
            lane = jax.lax.broadcasted_iota(jnp.int32, s_new.shape, 1)
            masked = jnp.where(lane < n_classes, s_new, -jnp.inf)
            m = jnp.max(masked, axis=1, keepdims=True)
            sh = masked - m
            lse = jnp.log(jnp.sum(jnp.exp(sh), axis=1, keepdims=True))
            o_ref[...] = sh - lse
        else:
            o_ref[:, :cp] = v_new
            o_ref[:, cp:] = s_new


def prop_step(coef, lap_bf16, state, *, cp, K, step, n_classes, bm, bn):
    npad = lap_bf16.shape[0]
    first = (step == 1)
    final = (step == K)
    in_w = cp if first else 2 * cp
    out_w = cp if final else 2 * cp
    kernel = functools.partial(_prop_kernel, cp=cp, K=K, step=step,
                               first=first, final=final, n_classes=n_classes)
    return pl.pallas_call(
        kernel,
        out_shape=jax.ShapeDtypeStruct((npad, out_w), jnp.float32),
        grid_spec=pltpu.PrefetchScalarGridSpec(
            num_scalar_prefetch=0,
            grid=(npad // bm, npad // bn),
            in_specs=[
                pl.BlockSpec(memory_space=pltpu.MemorySpace.SMEM),   # coefs
                pl.BlockSpec((bm, bn), lambda i, j: (i, j)),         # bf16 L tile
                pl.BlockSpec((bn, in_w), lambda i, j: (j, 0)),       # matmul RHS
                pl.BlockSpec((bm, in_w), lambda i, j: (i, 0)),       # epilogue rows
            ],
            out_specs=pl.BlockSpec((bm, out_w), lambda i, j: (i, 0)),
            scratch_shapes=[pltpu.VMEM((bm, in_w), jnp.float32)],
        ),
        compiler_params=pltpu.CompilerParams(
            dimension_semantics=("parallel", "arbitrary"),
            vmem_limit_bytes=32 * 1024 * 1024,
        ),
    )(coef, lap_bf16, state, state)


# ------------------------------------------------------------------
# Glue: dense sym-normalized Laplacian from edge_index (plain JAX)
# ------------------------------------------------------------------
def build_laplacian(edge_index, num_nodes):
    src, dst = edge_index
    a = jnp.zeros((num_nodes, num_nodes), jnp.float32).at[src, dst].add(1.0)
    deg = jnp.sum(a, axis=1)
    dinv = jnp.where(deg > 0, 1.0 / jnp.sqrt(jnp.maximum(deg, 1e-12)), 0.0)
    return jnp.eye(num_nodes, dtype=jnp.float32) - dinv[:, None] * a * dinv[None, :]


def bernnet_forward(x, edge_index, params, K, *, bm=512, bn=512):
    assert K >= 1
    n, f = x.shape
    hdim = params["w1"].shape[1]
    c = params["w2"].shape[1]
    cp = LANE                               # lane-dense class dim

    npad = _round_up(n, LANE)
    bm = _pick_block(npad, bm)
    bn = _pick_block(npad, bn)

    # Padded / lane-dense operands.
    x_pad = jnp.zeros((npad, f), jnp.float32).at[:n].set(x)
    w2p = jnp.zeros((hdim, cp), jnp.float32).at[:, :c].set(params["w2"])
    b2p = jnp.zeros((1, cp), jnp.float32).at[:, :c].set(params["b2"])

    lap = build_laplacian(edge_index, n)
    lap_pad = (jnp.zeros((npad, npad), jnp.float32)
               .at[:n, :n].set(lap)).astype(jnp.bfloat16)   # bf16 stream

    # 2-layer MLP (dropout = identity at inference) -> z = V_0.
    z = mlp_forward(x_pad, params["w1"], params["b1"], w2p, b2p, block_rows=bm)

    # Bernstein coefficients c_k = comb(K,k)/2^K * relu(temp)[k] (SMEM input).
    comb_v = jnp.array([math.comb(K, k) / (2.0 ** K) for k in range(K + 1)],
                       jnp.float32)
    coef = comb_v * jnp.maximum(params["temp"], 0.0)

    # Fused forward + Horner recurrence over the [V | S] state.
    state = z
    for step in range(1, K + 1):
        state = prop_step(coef, lap_pad, state, cp=cp, K=K, step=step,
                          n_classes=c, bm=bm, bn=bn)

    return state[:n, :c]


# ------------------------------------------------------------------
# Pure-JAX reference (original association) for a sanity check.
# ------------------------------------------------------------------
def bernnet_reference(x, edge_index, params, K):
    n = x.shape[0]
    lap = build_laplacian(edge_index, n)
    two = 2.0 * jnp.eye(n, dtype=jnp.float32) - lap
    h = jnp.maximum(x @ params["w1"] + params["b1"], 0.0)
    z = h @ params["w2"] + params["b2"]
    coef = (jnp.array([math.comb(K, k) / (2.0 ** K) for k in range(K + 1)],
                      jnp.float32) * jnp.maximum(params["temp"], 0.0))
    tmp = [z]
    for _ in range(K):
        tmp.append(two @ tmp[-1])
    out = coef[0] * tmp[K]
    for i in range(K):
        y = tmp[K - i - 1]
        for _ in range(i + 1):
            y = lap @ y
        out = out + coef[i + 1] * y
    return jax.nn.log_softmax(out, axis=1)


# ------------------------------------------------------------------
if __name__ == "__main__":
    # small config: N nodes, F features, H hidden, C classes, K polynomial order
    N, F, H, C, K = 16, 8, 32, 4, 3

    key = jax.random.PRNGKey(0)
    kx, k1, k2, k3, k4 = jax.random.split(key, 5)

    x = jax.random.normal(kx, (N, F), jnp.float32)

    # ring graph, undirected (both directions) -> symmetric adjacency
    idx = jnp.arange(N)
    src = jnp.concatenate([idx, (idx + 1) % N])
    dst = jnp.concatenate([(idx + 1) % N, idx])
    edge_index = jnp.stack([src, dst])

    params = {
        # Linear params stored as (in, out); deterministic init
        "w1": jax.random.normal(k1, (F, H), jnp.float32) * 0.1,
        "b1": jax.random.normal(k2, (1, H), jnp.float32) * 0.1,
        "w2": jax.random.normal(k3, (H, C), jnp.float32) * 0.1,
        "b2": jax.random.normal(k4, (1, C), jnp.float32) * 0.1,
        # Bern_prop.temp initialized to ones (reset_parameters)
        "temp": jnp.ones((K + 1,), jnp.float32),
    }

    fwd = jax.jit(bernnet_forward, static_argnums=(3,))
    out = fwd(x, edge_index, params, K)
    jax.block_until_ready(out)
    assert out.shape == (N, C)

    ref = bernnet_reference(x, edge_index, params, K)
    err = float(jnp.max(jnp.abs(out - ref)))
    assert err < 2e-2, f"max abs error {err}"

    print("KERNEL_OK")
</pallas_src>

<mosaic_0001>
module attributes {stable_mosaic.version = 11 : i64} {
  func.func @_prop_kernel(%arg0: i32, %arg1: i32, %arg2: memref<4xf32, #tpu.memory_space<smem>>, %arg3: memref<128x128xbf16, #tpu.memory_space<vmem>>, %arg4: memref<128x128xf32, #tpu.memory_space<vmem>>, %arg5: memref<128x128xf32, #tpu.memory_space<vmem>>, %arg6: memref<128x256xf32, #tpu.memory_space<vmem>>, %arg7: memref<128x128xf32, #tpu.memory_space<vmem>>) attributes {dimension_semantics = [#tpu.dimension_semantics<parallel>, #tpu.dimension_semantics<arbitrary>], iteration_bounds = array<i64: 1, 1>, scalar_prefetch = 0 : i64, scratch_operands = 1 : i64, tpu.core_type = #tpu.core_type<tc>, window_params = [{transform_indices = @transform_0, window_bounds = array<i64: 4>}, {transform_indices = @transform_1, window_bounds = array<i64: 128, 128>}, {transform_indices = @transform_2, window_bounds = array<i64: 128, 128>}, {transform_indices = @transform_3, window_bounds = array<i64: 128, 128>}, {transform_indices = @transform_4, window_bounds = array<i64: 128, 256>}]} {
    %c0_i32 = arith.constant 0 : i32
    %0 = arith.cmpi eq, %arg1, %c0_i32 : i32
    %1 = arith.extui %0 : i1 to i32
    %c0_i32_0 = arith.constant 0 : i32
    %2 = arith.cmpi ne, %1, %c0_i32_0 : i32
    scf.if %2 {
      %cst_10 = arith.constant 0.000000e+00 : f32
      %13 = vector.broadcast %cst_10 : f32 to vector<128x128xf32>
      %c0_11 = arith.constant 0 : index
      %c0_12 = arith.constant 0 : index
      %14 = vector.load %arg7[%c0_11, %c0_12] : memref<128x128xf32, #tpu.memory_space<vmem>>, vector<128x128xf32>
      tpu.vector_store %arg7[%c0_11, %c0_12], %13 {strides = array<i32>} : memref<128x128xf32, #tpu.memory_space<vmem>>, vector<128x128xf32>,
    } else {
    }
    %c0 = arith.constant 0 : index
    %c0_1 = arith.constant 0 : index
    %3 = vector.load %arg7[%c0, %c0_1] : memref<128x128xf32, #tpu.memory_space<vmem>>, vector<128x128xf32>
    %c0_2 = arith.constant 0 : index
    %c0_3 = arith.constant 0 : index
    %4 = vector.load %arg3[%c0_2, %c0_3] : memref<128x128xbf16, #tpu.memory_space<vmem>>, vector<128x128xbf16>
    %c0_4 = arith.constant 0 : index
    %c0_5 = arith.constant 0 : index
    %5 = vector.load %arg4[%c0_4, %c0_5] : memref<128x128xf32, #tpu.memory_space<vmem>>, vector<128x128xf32>
    %6 = arith.truncf %5 : vector<128x128xf32> to vector<128x128xbf16>
    %cst = arith.constant dense<0.000000e+00> : vector<128x128xf32>
    %7 = tpu.matmul %4, %6, %cst {dimension_numbers = #tpu.dot_dimension_numbers<[1], [0], [0], [1], [0, 0, 1, 1], [], []>} : vector<128x128xbf16>, vector<128x128xbf16>, vector<128x128xf32> -> vector<128x128xf32>
    %8 = arith.addf %3, %7 : vector<128x128xf32>
    %c0_6 = arith.constant 0 : index
    %c0_7 = arith.constant 0 : index
    %9 = vector.load %arg7[%c0_6, %c0_7] : memref<128x128xf32, #tpu.memory_space<vmem>>, vector<128x128xf32>
    tpu.vector_store %arg7[%c0_6, %c0_7], %8 {strides = array<i32>} : memref<128x128xf32, #tpu.memory_space<vmem>>, vector<128x128xf32>,
    %c0_i32_8 = arith.constant 0 : i32
    %10 = arith.cmpi eq, %arg1, %c0_i32_8 : i32
    %11 = arith.extui %10 : i1 to i32
    %c0_i32_9 = arith.constant 0 : i32
    %12 = arith.cmpi ne, %11, %c0_i32_9 : i32
    scf.if %12 {
      %c0_10 = arith.constant 0 : index
      %c0_11 = arith.constant 0 : index
      %13 = vector.load %arg7[%c0_10, %c0_11] : memref<128x128xf32, #tpu.memory_space<vmem>>, vector<128x128xf32>
      %c0_12 = arith.constant 0 : index
      %c0_13 = arith.constant 0 : index
      %14 = vector.load %arg5[%c0_12, %c0_13] : memref<128x128xf32, #tpu.memory_space<vmem>>, vector<128x128xf32>
      %cst_14 = arith.constant 2.000000e+00 : f32
      %15 = vector.broadcast %cst_14 : f32 to vector<128x128xf32>
      %16 = arith.mulf %15, %14 : vector<128x128xf32>
      %17 = arith.subf %16, %13 : vector<128x128xf32>
      %c3 = arith.constant 3 : index
      %18 = memref.load %arg2[%c3] : memref<4xf32, #tpu.memory_space<smem>>
      %19 = vector.broadcast %18 : f32 to vector<128x128xf32>
      %20 = arith.mulf %19, %13 : vector<128x128xf32>
      %c2 = arith.constant 2 : index
      %21 = memref.load %arg2[%c2] : memref<4xf32, #tpu.memory_space<smem>>
      %22 = vector.broadcast %21 : f32 to vector<128x128xf32>
      %23 = arith.mulf %22, %17 : vector<128x128xf32>
      %24 = arith.addf %20, %23 : vector<128x128xf32>
      %c0_15 = arith.constant 0 : index
      %c0_16 = arith.constant 0 : index
      %25 = vector.load %arg6[%c0_15, %c0_16] : memref<128x256xf32, #tpu.memory_space<vmem>>, vector<128x128xf32>
      tpu.vector_store %arg6[%c0_15, %c0_16], %17 {strides = array<i32>} : memref<128x256xf32, #tpu.memory_space<vmem>>, vector<128x128xf32>,
      %c0_17 = arith.constant 0 : index
      %c128 = arith.constant 128 : index
      %26 = vector.load %arg6[%c0_17, %c128] : memref<128x256xf32, #tpu.memory_space<vmem>>, vector<128x128xf32>
      tpu.vector_store %arg6[%c0_17, %c128], %24 {strides = array<i32>} : memref<128x256xf32, #tpu.memory_space<vmem>>, vector<128x128xf32>,
    } else {
    }
    return
  }
  func.func @transform_0(%arg0: i32, %arg1: i32) -> i32 {
    %c0_i32 = arith.constant 0 : i32
    %c0_i32_0 = arith.constant 0 : i32
    return %c0_i32 : i32
  }
  func.func @transform_1(%arg0: i32, %arg1: i32) -> (i32, i32) {
    %c0_i32 = arith.constant 0 : i32
    return %arg0, %arg1 : i32, i32
  }
  func.func @transform_2(%arg0: i32, %arg1: i32) -> (i32, i32) {
    %c0_i32 = arith.constant 0 : i32
    %c0_i32_0 = arith.constant 0 : i32
    return %arg1, %c0_i32 : i32, i32
  }
  func.func @transform_3(%arg0: i32, %arg1: i32) -> (i32, i32) {
    %c0_i32 = arith.constant 0 : i32
    %c0_i32_0 = arith.constant 0 : i32
    return %arg0, %c0_i32 : i32, i32
  }
  func.func @transform_4(%arg0: i32, %arg1: i32) -> (i32, i32) {
    %c0_i32 = arith.constant 0 : i32
    %c0_i32_0 = arith.constant 0 : i32
    return %arg0, %c0_i32 : i32, i32
  }
}

module attributes {stable_mosaic.version = 11 : i64} {
  func.func @_mlp_kernel(%arg0: i32, %arg1: memref<128x8xf32, #tpu.memory_space<vmem>>, %arg2: memref<8x32xf32, #tpu.memory_space<vmem>>, %arg3: memref<1x32xf32, #tpu.memory_space<vmem>>, %arg4: memref<32x128xf32, #tpu.memory_space<vmem>>, %arg5: memref<1x128xf32, #tpu.memory_space<vmem>>, %arg6: memref<128x128xf32, #tpu.memory_space<vmem>>) attributes {dimension_semantics = [#tpu.dimension_semantics<parallel>], iteration_bounds = array<i64: 1>, scalar_prefetch = 0 : i64, scratch_operands = 0 : i64, tpu.core_type = #tpu.core_type<tc>, window_params = [{transform_indices = @transform_0, window_bounds = array<i64: 128, 8>}, {pipeline_mode = #tpu.pipeline_mode<synchronous>, transform_indices = @transform_1, window_bounds = array<i64: 8, 32>}, {pipeline_mode = #tpu.pipeline_mode<synchronous>, transform_indices = @transform_2, window_bounds = array<i64: 1, 32>}, {pipeline_mode = #tpu.pipeline_mode<synchronous>, transform_indices = @transform_3, window_bounds = array<i64: 32, 128>}, {pipeline_mode = #tpu.pipeline_mode<synchronous>, transform_indices = @transform_4, window_bounds = array<i64: 1, 128>}, {transform_indices = @transform_5, window_bounds = array<i64: 128, 128>}]} {
    %c0 = arith.constant 0 : index
    %c0_0 = arith.constant 0 : index
    %0 = vector.load %arg1[%c0, %c0_0] : memref<128x8xf32, #tpu.memory_space<vmem>>, vector<128x8xf32>
    %c0_1 = arith.constant 0 : index
    %c0_2 = arith.constant 0 : index
    %1 = vector.load %arg2[%c0_1, %c0_2] : memref<8x32xf32, #tpu.memory_space<vmem>>, vector<8x32xf32>
    %cst = arith.constant dense<0.000000e+00> : vector<128x32xf32>
    %2 = tpu.matmul %0, %1, %cst {dimension_numbers = #tpu.dot_dimension_numbers<[1], [0], [0], [1], [0, 0, 1, 1], [], []>} : vector<128x8xf32>, vector<8x32xf32>, vector<128x32xf32> -> vector<128x32xf32>
    %c0_3 = arith.constant 0 : index
    %c0_4 = arith.constant 0 : index
    %3 = vector.load %arg3[%c0_3, %c0_4] : memref<1x32xf32, #tpu.memory_space<vmem>>, vector<1x32xf32>
    %4 = vector.broadcast %3 : vector<1x32xf32> to vector<128x32xf32>
    %5 = arith.addf %2, %4 : vector<128x32xf32>
    %cst_5 = arith.constant 0.000000e+00 : f32
    %6 = vector.broadcast %cst_5 : f32 to vector<128x32xf32>
    %7 = arith.maximumf %5, %6 : vector<128x32xf32>
    %c0_6 = arith.constant 0 : index
    %c0_7 = arith.constant 0 : index
    %8 = vector.load %arg4[%c0_6, %c0_7] : memref<32x128xf32, #tpu.memory_space<vmem>>, vector<32x128xf32>
    %cst_8 = arith.constant dense<0.000000e+00> : vector<128x128xf32>
    %9 = tpu.matmul %7, %8, %cst_8 {dimension_numbers = #tpu.dot_dimension_numbers<[1], [0], [0], [1], [0, 0, 1, 1], [], []>} : vector<128x32xf32>, vector<32x128xf32>, vector<128x128xf32> -> vector<128x128xf32>
    %c0_9 = arith.constant 0 : index
    %c0_10 = arith.constant 0 : index
    %10 = vector.load %arg5[%c0_9, %c0_10] : memref<1x128xf32, #tpu.memory_space<vmem>>, vector<1x128xf32>
    %11 = vector.broadcast %10 : vector<1x128xf32> to vector<128x128xf32>
    %12 = arith.addf %9, %11 : vector<128x128xf32>
    %c0_11 = arith.constant 0 : index
    %c0_12 = arith.constant 0 : index
    %13 = vector.load %arg6[%c0_11, %c0_12] : memref<128x128xf32, #tpu.memory_space<vmem>>, vector<128x128xf32>
    tpu.vector_store %arg6[%c0_11, %c0_12], %12 {strides = array<i32>} : memref<128x128xf32, #tpu.memory_space<vmem>>, vector<128x128xf32>,
    return
  }
  func.func @transform_0(%arg0: i32) -> (i32, i32) {
    %c0_i32 = arith.constant 0 : i32
    %c0_i32_0 = arith.constant 0 : i32
    return %arg0, %c0_i32 : i32, i32
  }
  func.func @transform_1(%arg0: i32) -> (i32, i32) {
    %c0_i32 = arith.constant 0 : i32
    %c0_i32_0 = arith.constant 0 : i32
    %c0_i32_1 = arith.constant 0 : i32
    return %c0_i32, %c0_i32_0 : i32, i32
  }
  func.func @transform_2(%arg0: i32) -> (i32, i32) {
    %c0_i32 = arith.constant 0 : i32
    %c0_i32_0 = arith.constant 0 : i32
    %c0_i32_1 = arith.constant 0 : i32
    return %c0_i32, %c0_i32_0 : i32, i32
  }
  func.func @transform_3(%arg0: i32) -> (i32, i32) {
    %c0_i32 = arith.constant 0 : i32
    %c0_i32_0 = arith.constant 0 : i32
    %c0_i32_1 = arith.constant 0 : i32
    return %c0_i32, %c0_i32_0 : i32, i32
  }
  func.func @transform_4(%arg0: i32) -> (i32, i32) {
    %c0_i32 = arith.constant 0 : i32
    %c0_i32_0 = arith.constant 0 : i32
    %c0_i32_1 = arith.constant 0 : i32
    return %c0_i32, %c0_i32_0 : i32, i32
  }
  func.func @transform_5(%arg0: i32) -> (i32, i32) {
    %c0_i32 = arith.constant 0 : i32
    %c0_i32_0 = arith.constant 0 : i32
    return %arg0, %c0_i32 : i32, i32
  }
}

module attributes {stable_mosaic.version = 11 : i64} {
  func.func @_prop_kernel(%arg0: i32, %arg1: i32, %arg2: memref<4xf32, #tpu.memory_space<smem>>, %arg3: memref<128x128xbf16, #tpu.memory_space<vmem>>, %arg4: memref<128x256xf32, #tpu.memory_space<vmem>>, %arg5: memref<128x256xf32, #tpu.memory_space<vmem>>, %arg6: memref<128x256xf32, #tpu.memory_space<vmem>>, %arg7: memref<128x256xf32, #tpu.memory_space<vmem>>) attributes {dimension_semantics = [#tpu.dimension_semantics<parallel>, #tpu.dimension_semantics<arbitrary>], iteration_bounds = array<i64: 1, 1>, scalar_prefetch = 0 : i64, scratch_operands = 1 : i64, tpu.core_type = #tpu.core_type<tc>, window_params = [{transform_indices = @transform_0, window_bounds = array<i64: 4>}, {transform_indices = @transform_1, window_bounds = array<i64: 128, 128>}, {transform_indices = @transform_2, window_bounds = array<i64: 128, 256>}, {transform_indices = @transform_3, window_bounds = array<i64: 128, 256>}, {transform_indices = @transform_4, window_bounds = array<i64: 128, 256>}]} {
    %c0_i32 = arith.constant 0 : i32
    %0 = arith.cmpi eq, %arg1, %c0_i32 : i32
    %1 = arith.extui %0 : i1 to i32
    %c0_i32_0 = arith.constant 0 : i32
    %2 = arith.cmpi ne, %1, %c0_i32_0 : i32
    scf.if %2 {
      %cst_10 = arith.constant 0.000000e+00 : f32
      %13 = vector.broadcast %cst_10 : f32 to vector<128x256xf32>
      %c0_11 = arith.constant 0 : index
      %c0_12 = arith.constant 0 : index
      %14 = vector.load %arg7[%c0_11, %c0_12] : memref<128x256xf32, #tpu.memory_space<vmem>>, vector<128x256xf32>
      tpu.vector_store %arg7[%c0_11, %c0_12], %13 {strides = array<i32>} : memref<128x256xf32, #tpu.memory_space<vmem>>, vector<128x256xf32>,
    } else {
    }
    %c0 = arith.constant 0 : index
    %c0_1 = arith.constant 0 : index
    %3 = vector.load %arg7[%c0, %c0_1] : memref<128x256xf32, #tpu.memory_space<vmem>>, vector<128x256xf32>
    %c0_2 = arith.constant 0 : index
    %c0_3 = arith.constant 0 : index
    %4 = vector.load %arg3[%c0_2, %c0_3] : memref<128x128xbf16, #tpu.memory_space<vmem>>, vector<128x128xbf16>
    %c0_4 = arith.constant 0 : index
    %c0_5 = arith.constant 0 : index
    %5 = vector.load %arg4[%c0_4, %c0_5] : memref<128x256xf32, #tpu.memory_space<vmem>>, vector<128x256xf32>
    %6 = arith.truncf %5 : vector<128x256xf32> to vector<128x256xbf16>
    %cst = arith.constant dense<0.000000e+00> : vector<128x256xf32>
    %7 = tpu.matmul %4, %6, %cst {dimension_numbers = #tpu.dot_dimension_numbers<[1], [0], [0], [1], [0, 0, 1, 1], [], []>} : vector<128x128xbf16>, vector<128x256xbf16>, vector<128x256xf32> -> vector<128x256xf32>
    %8 = arith.addf %3, %7 : vector<128x256xf32>
    %c0_6 = arith.constant 0 : index
    %c0_7 = arith.constant 0 : index
    %9 = vector.load %arg7[%c0_6, %c0_7] : memref<128x256xf32, #tpu.memory_space<vmem>>, vector<128x256xf32>
    tpu.vector_store %arg7[%c0_6, %c0_7], %8 {strides = array<i32>} : memref<128x256xf32, #tpu.memory_space<vmem>>, vector<128x256xf32>,
    %c0_i32_8 = arith.constant 0 : i32
    %10 = arith.cmpi eq, %arg1, %c0_i32_8 : i32
    %11 = arith.extui %10 : i1 to i32
    %c0_i32_9 = arith.constant 0 : i32
    %12 = arith.cmpi ne, %11, %c0_i32_9 : i32
    scf.if %12 {
      %c0_10 = arith.constant 0 : index
      %c0_11 = arith.constant 0 : index
      %13 = vector.load %arg7[%c0_10, %c0_11] : memref<128x256xf32, #tpu.memory_space<vmem>>, vector<128x256xf32>
      %14 = vector.extract_strided_slice %13 {offsets = [0, 0], sizes = [128, 128], strides = [1, 1]} : vector<128x256xf32> to vector<128x128xf32>
      %15 = vector.extract_strided_slice %13 {offsets = [0, 128], sizes = [128, 128], strides = [1, 1]} : vector<128x256xf32> to vector<128x128xf32>
      %c0_12 = arith.constant 0 : index
      %c0_13 = arith.constant 0 : index
      %16 = vector.load %arg5[%c0_12, %c0_13] : memref<128x256xf32, #tpu.memory_space<vmem>>, vector<128x128xf32>
      %cst_14 = arith.constant 2.000000e+00 : f32
      %17 = vector.broadcast %cst_14 : f32 to vector<128x128xf32>
      %18 = arith.mulf %17, %16 : vector<128x128xf32>
      %19 = arith.subf %18, %14 : vector<128x128xf32>
      %c1 = arith.constant 1 : index
      %20 = memref.load %arg2[%c1] : memref<4xf32, #tpu.memory_space<smem>>
      %21 = vector.broadcast %20 : f32 to vector<128x128xf32>
      %22 = arith.mulf %21, %19 : vector<128x128xf32>
      %23 = arith.addf %15, %22 : vector<128x128xf32>
      %c0_15 = arith.constant 0 : index
      %c0_16 = arith.constant 0 : index
      %24 = vector.load %arg6[%c0_15, %c0_16] : memref<128x256xf32, #tpu.memory_space<vmem>>, vector<128x128xf32>
      tpu.vector_store %arg6[%c0_15, %c0_16], %19 {strides = array<i32>} : memref<128x256xf32, #tpu.memory_space<vmem>>, vector<128x128xf32>,
      %c0_17 = arith.constant 0 : index
      %c128 = arith.constant 128 : index
      %25 = vector.load %arg6[%c0_17, %c128] : memref<128x256xf32, #tpu.memory_space<vmem>>, vector<128x128xf32>
      tpu.vector_store %arg6[%c0_17, %c128], %23 {strides = array<i32>} : memref<128x256xf32, #tpu.memory_space<vmem>>, vector<128x128xf32>,
    } else {
    }
    return
  }
  func.func @transform_0(%arg0: i32, %arg1: i32) -> i32 {
    %c0_i32 = arith.constant 0 : i32
    %c0_i32_0 = arith.constant 0 : i32
    return %c0_i32 : i32
  }
  func.func @transform_1(%arg0: i32, %arg1: i32) -> (i32, i32) {
    %c0_i32 = arith.constant 0 : i32
    return %arg0, %arg1 : i32, i32
  }
  func.func @transform_2(%arg0: i32, %arg1: i32) -> (i32, i32) {
    %c0_i32 = arith.constant 0 : i32
    %c0_i32_0 = arith.constant 0 : i32
    return %arg1, %c0_i32 : i32, i32
  }
  func.func @transform_3(%arg0: i32, %arg1: i32) -> (i32, i32) {
    %c0_i32 = arith.constant 0 : i32
    %c0_i32_0 = arith.constant 0 : i32
    return %arg0, %c0_i32 : i32, i32
  }
  func.func @transform_4(%arg0: i32, %arg1: i32) -> (i32, i32) {
    %c0_i32 = arith.constant 0 : i32
    %c0_i32_0 = arith.constant 0 : i32
    return %arg0, %c0_i32 : i32, i32
  }
}

module attributes {stable_mosaic.version = 11 : i64} {
  func.func @_prop_kernel(%arg0: i32, %arg1: i32, %arg2: memref<4xf32, #tpu.memory_space<smem>>, %arg3: memref<128x128xbf16, #tpu.memory_space<vmem>>, %arg4: memref<128x256xf32, #tpu.memory_space<vmem>>, %arg5: memref<128x256xf32, #tpu.memory_space<vmem>>, %arg6: memref<128x128xf32, #tpu.memory_space<vmem>>, %arg7: memref<128x256xf32, #tpu.memory_space<vmem>>) attributes {dimension_semantics = [#tpu.dimension_semantics<parallel>, #tpu.dimension_semantics<arbitrary>], iteration_bounds = array<i64: 1, 1>, scalar_prefetch = 0 : i64, scratch_operands = 1 : i64, tpu.core_type = #tpu.core_type<tc>, window_params = [{transform_indices = @transform_0, window_bounds = array<i64: 4>}, {transform_indices = @transform_1, window_bounds = array<i64: 128, 128>}, {transform_indices = @transform_2, window_bounds = array<i64: 128, 256>}, {transform_indices = @transform_3, window_bounds = array<i64: 128, 256>}, {transform_indices = @transform_4, window_bounds = array<i64: 128, 128>}]} {
    %c0_i32 = arith.constant 0 : i32
    %0 = arith.cmpi eq, %arg1, %c0_i32 : i32
    %1 = arith.extui %0 : i1 to i32
    %c0_i32_0 = arith.constant 0 : i32
    %2 = arith.cmpi ne, %1, %c0_i32_0 : i32
    scf.if %2 {
      %cst_10 = arith.constant 0.000000e+00 : f32
      %13 = vector.broadcast %cst_10 : f32 to vector<128x256xf32>
      %c0_11 = arith.constant 0 : index
      %c0_12 = arith.constant 0 : index
      %14 = vector.load %arg7[%c0_11, %c0_12] : memref<128x256xf32, #tpu.memory_space<vmem>>, vector<128x256xf32>
      tpu.vector_store %arg7[%c0_11, %c0_12], %13 {strides = array<i32>} : memref<128x256xf32, #tpu.memory_space<vmem>>, vector<128x256xf32>,
    } else {
    }
    %c0 = arith.constant 0 : index
    %c0_1 = arith.constant 0 : index
    %3 = vector.load %arg7[%c0, %c0_1] : memref<128x256xf32, #tpu.memory_space<vmem>>, vector<128x256xf32>
    %c0_2 = arith.constant 0 : index
    %c0_3 = arith.constant 0 : index
    %4 = vector.load %arg3[%c0_2, %c0_3] : memref<128x128xbf16, #tpu.memory_space<vmem>>, vector<128x128xbf16>
    %c0_4 = arith.constant 0 : index
    %c0_5 = arith.constant 0 : index
    %5 = vector.load %arg4[%c0_4, %c0_5] : memref<128x256xf32, #tpu.memory_space<vmem>>, vector<128x256xf32>
    %6 = arith.truncf %5 : vector<128x256xf32> to vector<128x256xbf16>
    %cst = arith.constant dense<0.000000e+00> : vector<128x256xf32>
    %7 = tpu.matmul %4, %6, %cst {dimension_numbers = #tpu.dot_dimension_numbers<[1], [0], [0], [1], [0, 0, 1, 1], [], []>} : vector<128x128xbf16>, vector<128x256xbf16>, vector<128x256xf32> -> vector<128x256xf32>
    %8 = arith.addf %3, %7 : vector<128x256xf32>
    %c0_6 = arith.constant 0 : index
    %c0_7 = arith.constant 0 : index
    %9 = vector.load %arg7[%c0_6, %c0_7] : memref<128x256xf32, #tpu.memory_space<vmem>>, vector<128x256xf32>
    tpu.vector_store %arg7[%c0_6, %c0_7], %8 {strides = array<i32>} : memref<128x256xf32, #tpu.memory_space<vmem>>, vector<128x256xf32>,
    %c0_i32_8 = arith.constant 0 : i32
    %10 = arith.cmpi eq, %arg1, %c0_i32_8 : i32
    %11 = arith.extui %10 : i1 to i32
    %c0_i32_9 = arith.constant 0 : i32
    %12 = arith.cmpi ne, %11, %c0_i32_9 : i32
    scf.if %12 {
      %c0_10 = arith.constant 0 : index
      %c0_11 = arith.constant 0 : index
      %13 = vector.load %arg7[%c0_10, %c0_11] : memref<128x256xf32, #tpu.memory_space<vmem>>, vector<128x256xf32>
      %14 = vector.extract_strided_slice %13 {offsets = [0, 0], sizes = [128, 128], strides = [1, 1]} : vector<128x256xf32> to vector<128x128xf32>
      %15 = vector.extract_strided_slice %13 {offsets = [0, 128], sizes = [128, 128], strides = [1, 1]} : vector<128x256xf32> to vector<128x128xf32>
      %c0_12 = arith.constant 0 : index
      %c0_13 = arith.constant 0 : index
      %16 = vector.load %arg5[%c0_12, %c0_13] : memref<128x256xf32, #tpu.memory_space<vmem>>, vector<128x128xf32>
      %cst_14 = arith.constant 2.000000e+00 : f32
      %17 = vector.broadcast %cst_14 : f32 to vector<128x128xf32>
      %18 = arith.mulf %17, %16 : vector<128x128xf32>
      %19 = arith.subf %18, %14 : vector<128x128xf32>
      %c0_15 = arith.constant 0 : index
      %20 = memref.load %arg2[%c0_15] : memref<4xf32, #tpu.memory_space<smem>>
      %21 = vector.broadcast %20 : f32 to vector<128x128xf32>
      %22 = arith.mulf %21, %19 : vector<128x128xf32>
      %23 = arith.addf %15, %22 : vector<128x128xf32>
      %24 = tpu.iota {dimensions = array<i32: 1>} : vector<128x128xi32>
      %c4_i32 = arith.constant 4 : i32
      %25 = vector.broadcast %c4_i32 : i32 to vector<128x128xi32>
      %26 = arith.cmpi slt, %24, %25 : vector<128x128xi32>
      %cst_16 = arith.constant 0xFF800000 : f32
      %27 = vector.broadcast %cst_16 : f32 to vector<128x128xf32>
      %28 = arith.select %26, %23, %27 : vector<128x128xi1>, vector<128x128xf32>
      %cst_17 = arith.constant dense<0xFF800000> : vector<128xf32>
      %29 = vector.multi_reduction <maximumf>, %28, %cst_17 [1] : vector<128x128xf32> to vector<128xf32>
      %30 = vector.shape_cast %29 : vector<128xf32> to vector<128x1xf32>
      %31 = vector.broadcast %30 : vector<128x1xf32> to vector<128x128xf32>
      %32 = arith.subf %28, %31 : vector<128x128xf32>
      %33 = math.exp %32 : vector<128x128xf32>
      %cst_18 = arith.constant dense<0.000000e+00> : vector<128xf32>
      %34 = vector.multi_reduction <add>, %33, %cst_18 [1] : vector<128x128xf32> to vector<128xf32>
      %35 = vector.shape_cast %34 : vector<128xf32> to vector<128x1xf32>
      %36 = math.log %35 : vector<128x1xf32>
      %37 = vector.broadcast %36 : vector<128x1xf32> to vector<128x128xf32>
      %38 = arith.subf %32, %37 : vector<128x128xf32>
      %c0_19 = arith.constant 0 : index
      %c0_20 = arith.constant 0 : index
      %39 = vector.load %arg6[%c0_19, %c0_20] : memref<128x128xf32, #tpu.memory_space<vmem>>, vector<128x128xf32>
      tpu.vector_store %arg6[%c0_19, %c0_20], %38 {strides = array<i32>} : memref<128x128xf32, #tpu.memory_space<vmem>>, vector<128x128xf32>,
    } else {
    }
    return
  }
  func.func @transform_0(%arg0: i32, %arg1: i32) -> i32 {
    %c0_i32 = arith.constant 0 : i32
    %c0_i32_0 = arith.constant 0 : i32
    return %c0_i32 : i32
  }
  func.func @transform_1(%arg0: i32, %arg1: i32) -> (i32, i32) {
    %c0_i32 = arith.constant 0 : i32
    return %arg0, %arg1 : i32, i32
  }
  func.func @transform_2(%arg0: i32, %arg1: i32) -> (i32, i32) {
    %c0_i32 = arith.constant 0 : i32
    %c0_i32_0 = arith.constant 0 : i32
    return %arg1, %c0_i32 : i32, i32
  }
  func.func @transform_3(%arg0: i32, %arg1: i32) -> (i32, i32) {
    %c0_i32 = arith.constant 0 : i32
    %c0_i32_0 = arith.constant 0 : i32
    return %arg0, %c0_i32 : i32, i32
  }
  func.func @transform_4(%arg0: i32, %arg1: i32) -> (i32, i32) {
    %c0_i32 = arith.constant 0 : i32
    %c0_i32_0 = arith.constant 0 : i32
    return %arg0, %c0_i32 : i32, i32
  }
}

</mosaic_0001>

<llo_original>
// kernel: bernnet_forward.4
$region0: #{bernnet_forward.4}
  #allocation0 [shape = 'u32[]', space=smem, size = 0x4, offset = 0x4, fixed_abs, tag = 'smem constant byte address 0x4 - core index']
  #allocation1 [shape = 'u32[72,128]{1,0:T(1,128)}', space=vmem, size = 0x9000, scoped, tag = 'internal scratch']
  %s0 = inlined_call_operand.vmem [shape: f32[128,8], index: 0, kind: input, shape index: {}]
  %s1 = inlined_call_operand.vmem [shape: f32[8,32], index: 1, kind: input, shape index: {}]
  %s2 = inlined_call_operand.vmem [shape: f32[1,32], index: 2, kind: input, shape index: {}]
  %s3 = inlined_call_operand.vmem [shape: f32[32,128], index: 3, kind: input, shape index: {}]
  %s4 = inlined_call_operand.vmem [shape: f32[1,128], index: 4, kind: input, shape index: {}]
  %s5 = inlined_call_operand.vmem [shape: f32[128,128], index: 5, kind: output, shape index: {}]
  %s6 = sld [smem:[#allocation0]]
  $region30: #{bernnet_forward.4} parent=0
    _
  %s8 = ssub.s32 1, %s6
  %s9 = scalar_select 0, %s8, %s6
  // Predicated region
  $region2: #{bernnet_forward.4} parent=0 // pred_check
    _
  $region3: #{bernnet_forward.4} parent=0 // pred_check_branch
    %11 = sbr.rel (0) target = $region5
  $region4: #{bernnet_forward.4} parent=0 // pred_region
    _
  $region5: #{bernnet_forward.4} parent=0 // pred_fallthru
    _
  // Predicated region
  $region6: #{bernnet_forward.4} parent=0 // pred_check
    _
  $region7: #{bernnet_forward.4} parent=0 // pred_check_branch
    %13 = sbr.rel (0) target = $region9
  $region8: #{bernnet_forward.4} parent=0 // pred_region
    _
  $region9: #{bernnet_forward.4} parent=0 // pred_fallthru
    _
  // Predicated region
  $region10: #{bernnet_forward.4} parent=0 // pred_check
    _
  $region11: #{bernnet_forward.4} parent=0 // pred_check_branch
    %15 = sbr.rel (0) target = $region13
  $region12: #{bernnet_forward.4} parent=0 // pred_region
    _
  $region13: #{bernnet_forward.4} parent=0 // pred_fallthru
    _
  // Predicated region
  $region14: #{bernnet_forward.4} parent=0 // pred_check
    _
  $region15: #{bernnet_forward.4} parent=0 // pred_check_branch
    %17 = sbr.rel (0) target = $region17
  $region16: #{bernnet_forward.4} parent=0 // pred_region
    _
  $region17: #{bernnet_forward.4} parent=0 // pred_fallthru
    _
  // Predicated region
  $region18: #{bernnet_forward.4} parent=0 // pred_check
    _
  $region19: #{bernnet_forward.4} parent=0 // pred_check_branch
    %19 = sbr.rel (0) target = $region21
  $region20: #{bernnet_forward.4} parent=0 // pred_region
    _
  $region21: #{bernnet_forward.4} parent=0 // pred_fallthru
    _
  %v20 = vld [vmem:[%s0] sm:$0xff]
  %v21 = vld [vmem:[%s0 + $0x8] sm:$0xff]
  %v22 = vld [vmem:[%s0 + $0x10] sm:$0xff]
  %v23 = vld [vmem:[%s0 + $0x18] sm:$0xff]
  %v24 = vld [vmem:[%s0 + $0x20] sm:$0xff]
  %v25 = vld [vmem:[%s0 + $0x28] sm:$0xff]
  %v26 = vld [vmem:[%s0 + $0x30] sm:$0xff]
  %v27 = vld [vmem:[%s0 + $0x38] sm:$0xff]
  %v28 = vld [vmem:[%s0 + $0x40] sm:$0xff]
  %v29 = vld [vmem:[%s0 + $0x48] sm:$0xff]
  %v30 = vld [vmem:[%s0 + $0x50] sm:$0xff]
  %v31 = vld [vmem:[%s0 + $0x58] sm:$0xff]
  %v32 = vld [vmem:[%s0 + $0x60] sm:$0xff]
  %v33 = vld [vmem:[%s0 + $0x68] sm:$0xff]
  %v34 = vld [vmem:[%s0 + $0x70] sm:$0xff]
  %v35 = vld [vmem:[%s0 + $0x78] sm:$0xff]
  %v36 = vld [vmem:[%s1] sm:$0xff]
  %v37 = vld [vmem:[%s2] sm:$0x1]
  %v39 = vperm.slane %v37, 0
  %vm41 = vcmask 64512
  %v43 = vsel %vm41, %v20, 0
  %v46 = vsel %vm41, %v21, 0
  %v49 = vsel %vm41, %v22, 0
  %v52 = vsel %vm41, %v23, 0
  %v55 = vsel %vm41, %v24, 0
  %v58 = vsel %vm41, %v25, 0
  %v61 = vsel %vm41, %v26, 0
  %v64 = vsel %vm41, %v27, 0
  %v67 = vsel %vm41, %v28, 0
  %v70 = vsel %vm41, %v29, 0
  %v73 = vsel %vm41, %v30, 0
  %v76 = vsel %vm41, %v31, 0
  %v79 = vsel %vm41, %v32, 0
  %v82 = vsel %vm41, %v33, 0
  %v85 = vsel %vm41, %v34, 0
  %v88 = vsel %vm41, %v35, 0
  %90 = vmatpush.msra.mxu0 0.0
  %91 = vmatpush.msra.mxu0 0.0
  %92 = vmatpush.msra.mxu0 0.0
  %93 = vmatpush.msra.mxu0 0.0
  %94 = vmatpush.msra.mxu0 0.0
  %95 = vmatpush.msra.mxu0 0.0
  %96 = vmatpush.msra.mxu0 0.0
  %97 = vmatpush.msra.mxu0 0.0
  %98 = vmatpush.msra.mxu0 0.0
  %99 = vmatpush.msra.mxu0 0.0
  %100 = vmatpush.msra.mxu0 0.0
  %101 = vmatpush.msra.mxu0 0.0
  %102 = vmatpush.msra.mxu0 0.0
  %103 = vmatpush.msra.mxu0 0.0
  %104 = vmatpush.msra.mxu0 0.0
  %105 = vmatpush.msra.mxu0 %v36
  %106 = vmatmul.f32.gmra.mxu0 %v43
  %v107 = vpop.f32.mrf.mxu0
  %v108 = vadd.f32 %v39, %v107
  %109 = vmatmul.f32.gmra.mxu0 %v46
  %v110 = vpop.f32.mrf.mxu0
  %v111 = vadd.f32 %v39, %v110
  %112 = vmatmul.f32.gmra.mxu0 %v49
  %v113 = vpop.f32.mrf.mxu0
  %v114 = vadd.f32 %v39, %v113
  %115 = vmatmul.f32.gmra.mxu0 %v52
  %v116 = vpop.f32.mrf.mxu0
  %v117 = vadd.f32 %v39, %v116
  %118 = vmatmul.f32.gmra.mxu0 %v55
  %v119 = vpop.f32.mrf.mxu0
  %v120 = vadd.f32 %v39, %v119
  %121 = vmatmul.f32.gmra.mxu0 %v58
  %v122 = vpop.f32.mrf.mxu0
  %v123 = vadd.f32 %v39, %v122
  %124 = vmatmul.f32.gmra.mxu0 %v61
  %v125 = vpop.f32.mrf.mxu0
  %v126 = vadd.f32 %v39, %v125
  %127 = vmatmul.f32.gmra.mxu0 %v64
  %v128 = vpop.f32.mrf.mxu0
  %v129 = vadd.f32 %v39, %v128
  %130 = vmatmul.f32.gmra.mxu0 %v67
  %v131 = vpop.f32.mrf.mxu0
  %v132 = vadd.f32 %v39, %v131
  %133 = vmatmul.f32.gmra.mxu0 %v70
  %v134 = vpop.f32.mrf.mxu0
  %v135 = vadd.f32 %v39, %v134
  %136 = vmatmul.f32.gmra.mxu0 %v73
  %v137 = vpop.f32.mrf.mxu0
  %v138 = vadd.f32 %v39, %v137
  %139 = vmatmul.f32.gmra.mxu0 %v76
  %v140 = vpop.f32.mrf.mxu0
  %v141 = vadd.f32 %v39, %v140
  %142 = vmatmul.f32.gmra.mxu0 %v79
  %v143 = vpop.f32.mrf.mxu0
  %v144 = vadd.f32 %v39, %v143
  %145 = vmatmul.f32.gmra.mxu0 %v82
  %v146 = vpop.f32.mrf.mxu0
  %v147 = vadd.f32 %v39, %v146
  %148 = vmatmul.f32.gmra.mxu0 %v85
  %v149 = vpop.f32.mrf.mxu0
  %v150 = vadd.f32 %v39, %v149
  %151 = vmatmul.f32.gmra.mxu0 %v88
  %v152 = vpop.f32.mrf.mxu0
  %v153 = vadd.f32 %v39, %v152
  %154 = vdwg.mxu0
  %v155 = vmax.f32 %v108, 0.0
  %v156 = vmax.f32 %v111, 0.0
  %v157 = vmax.f32 %v114, 0.0
  %v158 = vmax.f32 %v117, 0.0
  %v159 = vmax.f32 %v120, 0.0
  %v160 = vmax.f32 %v123, 0.0
  %v161 = vmax.f32 %v126, 0.0
  %v162 = vmax.f32 %v129, 0.0
  %v163 = vmax.f32 %v132, 0.0
  %v164 = vmax.f32 %v135, 0.0
  %v165 = vmax.f32 %v138, 0.0
  %v166 = vmax.f32 %v141, 0.0
  %v167 = vmax.f32 %v144, 0.0
  %v168 = vmax.f32 %v147, 0.0
  %v169 = vmax.f32 %v150, 0.0
  %v170 = vmax.f32 %v153, 0.0
  %v171 = vld [vmem:[%s3] sm:$0xff]
  %v172 = vld [vmem:[%s3 + $0x8] sm:$0xff]
  %v173 = vld [vmem:[%s3 + $0x10] sm:$0xff]
  %v174 = vld [vmem:[%s3 + $0x18] sm:$0xff]
  %v175 = vld [vmem:[%s4] sm:$0x1]
  %v177 = vperm.slane %v175, 0
  %vm179 = vcmask 261120
  %v181 = vsel %vm179, %v155, 0
  %v184 = vsel %vm179, %v156, 0
  %v187 = vsel %vm179, %v157, 0
  %v190 = vsel %vm179, %v158, 0
  %v193 = vsel %vm179, %v159, 0
  %v196 = vsel %vm179, %v160, 0
  %v199 = vsel %vm179, %v161, 0
  %v202 = vsel %vm179, %v162, 0
  %v205 = vsel %vm179, %v163, 0
  %v208 = vsel %vm179, %v164, 0
  %v211 = vsel %vm179, %v165, 0
  %v214 = vsel %vm179, %v166, 0
  %v217 = vsel %vm179, %v167, 0
  %v220 = vsel %vm179, %v168, 0
  %v223 = vsel %vm179, %v169, 0
  %v226 = vsel %vm179, %v170, 0
  %228 = vmatpush.msra.mxu0 0.0
  %229 = vmatpush.msra.mxu0 0.0
  %230 = vmatpush.msra.mxu0 0.0
  %231 = vmatpush.msra.mxu0 0.0
  %232 = vmatpush.msra.mxu0 0.0
  %233 = vmatpush.msra.mxu0 0.0
  %234 = vmatpush.msra.mxu0 0.0
  %235 = vmatpush.msra.mxu0 0.0
  %236 = vmatpush.msra.mxu0 0.0
  %237 = vmatpush.msra.mxu0 0.0
  %238 = vmatpush.msra.mxu0 0.0
  %239 = vmatpush.msra.mxu0 0.0
  %240 = vmatpush.msra.mxu0 %v174
  %241 = vmatpush.msra.mxu0 %v173
  %242 = vmatpush.msra.mxu0 %v172
  %243 = vmatpush.msra.mxu0 %v171
  %244 = vmatmul.f32.gmra.mxu0 %v181
  %v245 = vpop.f32.mrf.mxu0
  %v246 = vadd.f32 %v177, %v245
  %247 = vmatmul.f32.gmra.mxu0 %v184
  %v248 = vpop.f32.mrf.mxu0
  %v249 = vadd.f32 %v177, %v248
  %250 = vmatmul.f32.gmra.mxu0 %v187
  %v251 = vpop.f32.mrf.mxu0
  %v252 = vadd.f32 %v177, %v251
  %253 = vmatmul.f32.gmra.mxu0 %v190
  %v254 = vpop.f32.mrf.mxu0
  %v255 = vadd.f32 %v177, %v254
  %256 = vmatmul.f32.gmra.mxu0 %v193
  %v257 = vpop.f32.mrf.mxu0
  %v258 = vadd.f32 %v177, %v257
  %259 = vmatmul.f32.gmra.mxu0 %v196
  %v260 = vpop.f32.mrf.mxu0
  %v261 = vadd.f32 %v177, %v260
  %262 = vmatmul.f32.gmra.mxu0 %v199
  %v263 = vpop.f32.mrf.mxu0
  %v264 = vadd.f32 %v177, %v263
  %265 = vmatmul.f32.gmra.mxu0 %v202
  %v266 = vpop.f32.mrf.mxu0
  %v267 = vadd.f32 %v177, %v266
  %268 = vmatmul.f32.gmra.mxu0 %v205
  %v269 = vpop.f32.mrf.mxu0
  %v270 = vadd.f32 %v177, %v269
  %271 = vmatmul.f32.gmra.mxu0 %v208
  %v272 = vpop.f32.mrf.mxu0
  %v273 = vadd.f32 %v177, %v272
  %274 = vmatmul.f32.gmra.mxu0 %v211
  %v275 = vpop.f32.mrf.mxu0
  %v276 = vadd.f32 %v177, %v275
  %277 = vmatmul.f32.gmra.mxu0 %v214
  %v278 = vpop.f32.mrf.mxu0
  %v279 = vadd.f32 %v177, %v278
  %280 = vmatmul.f32.gmra.mxu0 %v217
  %v281 = vpop.f32.mrf.mxu0
  %v282 = vadd.f32 %v177, %v281
  %283 = vmatmul.f32.gmra.mxu0 %v220
  %v284 = vpop.f32.mrf.mxu0
  %v285 = vadd.f32 %v177, %v284
  %286 = vmatmul.f32.gmra.mxu0 %v223
  %v287 = vpop.f32.mrf.mxu0
  %v288 = vadd.f32 %v177, %v287
  %289 = vmatmul.f32.gmra.mxu0 %v226
  %v290 = vpop.f32.mrf.mxu0
  %v291 = vadd.f32 %v177, %v290
  %292 = vdwg.mxu0
  %293 = vst [vmem:[%s5] sm:$0xff] %v246
  %294 = vst [vmem:[%s5 + $0x8] sm:$0xff] %v249
  %295 = vst [vmem:[%s5 + $0x10] sm:$0xff] %v252
  %296 = vst [vmem:[%s5 + $0x18] sm:$0xff] %v255
  %297 = vst [vmem:[%s5 + $0x20] sm:$0xff] %v258
  %298 = vst [vmem:[%s5 + $0x28] sm:$0xff] %v261
  %299 = vst [vmem:[%s5 + $0x30] sm:$0xff] %v264
  %300 = vst [vmem:[%s5 + $0x38] sm:$0xff] %v267
  %301 = vst [vmem:[%s5 + $0x40] sm:$0xff] %v270
  %302 = vst [vmem:[%s5 + $0x48] sm:$0xff] %v273
  %303 = vst [vmem:[%s5 + $0x50] sm:$0xff] %v276
  %304 = vst [vmem:[%s5 + $0x58] sm:$0xff] %v279
  %305 = vst [vmem:[%s5 + $0x60] sm:$0xff] %v282
  %306 = vst [vmem:[%s5 + $0x68] sm:$0xff] %v285
  %307 = vst [vmem:[%s5 + $0x70] sm:$0xff] %v288
  %308 = vst [vmem:[%s5 + $0x78] sm:$0xff] %v291
  // Predicated region
  $region22: #{bernnet_forward.4} parent=0 // pred_check
    _
  $region23: #{bernnet_forward.4} parent=0 // pred_check_branch
    %310 = sbr.rel (0) target = $region25
  $region24: #{bernnet_forward.4} parent=0 // pred_region
    _
  $region25: #{bernnet_forward.4} parent=0 // pred_fallthru
    _
  // Predicated region
  $region26: #{bernnet_forward.4} parent=0 // pred_check
    _
  $region27: #{bernnet_forward.4} parent=0 // pred_check_branch
    %312 = sbr.rel (0) target = $region29
  $region28: #{bernnet_forward.4} parent=0 // pred_region
    _
  $region29: #{bernnet_forward.4} parent=0 // pred_fallthru
    _

// kernel: bernnet_forward.5
$region0: #{bernnet_forward.5}
  #allocation0 [shape = 'u32[]', space=smem, size = 0x4, offset = 0x4, fixed_abs, tag = 'smem constant byte address 0x4 - core index']
  #allocation1 [shape = 'u32[72,128]{1,0:T(1,128)}', space=vmem, size = 0x9000, scoped, tag = 'internal scratch']
  #allocation2 [shape = 'f32[128,128]{1,0:T(8,128)}', space=vmem, size = 0x10000, scoped, tag = 'scratch operand']
  %s0 = inlined_call_operand.vmem [shape: f32[4], index: 0, kind: input, shape index: {}]
  %s1 = inlined_call_operand.vmem [shape: bf16[128,128], index: 1, kind: input, shape index: {}]
  %s2 = inlined_call_operand.vmem [shape: f32[128,128], index: 2, kind: input, shape index: {}, may-alias: {2,3}]
  %s3 = inlined_call_operand.vmem [shape: f32[128,128], index: 3, kind: input, shape index: {}, may-alias: {2,3}]
  %s4 = inlined_call_operand.vmem [shape: f32[128,256], index: 4, kind: output, shape index: {}]
  %s5 = sld [smem:[#allocation0]]
  $region38: #{bernnet_forward.5} parent=0
    _
  %s7 = ssub.s32 1, %s5
  %s8 = scalar_select 0, %s7, %s5
  $region1: #{bernnet_forward.5} parent=0
    #allocation3 [shape = 'u8[512]{0}', space=smem, size = 0x200, scoped, tag = 'input window, operand 0, single buffered']
    #allocation4 [shape = 's32[1]{0}', space=sflag, size = 0x4, scoped, tag = 'scoped memory for bernnet_forward.5']
    %9 = vsyncpa [#allocation4], 0
    // Predicated region
    $region2: #{bernnet_forward.5} parent=1 // pred_check
      _
    $region3: #{bernnet_forward.5} parent=1 // pred_check_branch
      %11 = sbr.rel (0) target = $region5
    $region4: #{bernnet_forward.5} parent=1 // pred_region
      %13 = vsyncadd [#allocation4], 0
      %s15 = sshll.u32 %s0, 4
      %s16 = int_to_ptr.vmem [resolvable:$true] %s15
      %18 = dma.vmem_to_smem %s16, 16, [#allocation3], [#allocation4]
    $region5: #{bernnet_forward.5} parent=1 // pred_fallthru
      _
    // Predicated region
    $region6: #{bernnet_forward.5} parent=1 // pred_check
      _
    $region7: #{bernnet_forward.5} parent=1 // pred_check_branch
      %20 = sbr.rel (0) target = $region9
    $region8: #{bernnet_forward.5} parent=1 // pred_region
      _
    $region9: #{bernnet_forward.5} parent=1 // pred_fallthru
      _
    // Predicated region
    $region10: #{bernnet_forward.5} parent=1 // pred_check
      _
    $region11: #{bernnet_forward.5} parent=1 // pred_check_branch
      %22 = sbr.rel (0) target = $region13
    $region12: #{bernnet_forward.5} parent=1 // pred_region
      _
    $region13: #{bernnet_forward.5} parent=1 // pred_fallthru
      _
    // Predicated region
    $region14: #{bernnet_forward.5} parent=1 // pred_check
      _
    $region15: #{bernnet_forward.5} parent=1 // pred_check_branch
      %24 = sbr.rel (0) target = $region17
    $region16: #{bernnet_forward.5} parent=1 // pred_region
      _
    $region17: #{bernnet_forward.5} parent=1 // pred_fallthru
      _
    // Predicated region
    $region18: #{bernnet_forward.5} parent=1 // pred_check
      _
    $region19: #{bernnet_forward.5} parent=1 // pred_check_branch
      %26 = sbr.rel (0) target = $region21
    $region20: #{bernnet_forward.5} parent=1 // pred_region
      %28 = dma.done [#allocation4], 16
    $region21: #{bernnet_forward.5} parent=1 // pred_fallthru
      _
    %29 = sfence
    %p30 = scmp.eq.s32.totalorder 0, 0
    // Predicated region
    $region22: #{bernnet_forward.5} parent=1 // pred_check
      %p31 = pneg %p30
    $region23: #{bernnet_forward.5} parent=1 // pred_check_branch
      %33 = sbr.rel (%p31) target = $region25
    $region24: #{bernnet_forward.5} parent=1 // pred_region
      %34 = vst [vmem:[#allocation2] sm:$0xff] 0.0
      %35 = vst [vmem:[#allocation2 + $0x8] sm:$0xff] 0.0
      %36 = vst [vmem:[#allocation2 + $0x10] sm:$0xff] 0.0
      %37 = vst [vmem:[#allocation2 + $0x18] sm:$0xff] 0.0
      %38 = vst [vmem:[#allocation2 + $0x20] sm:$0xff] 0.0
      %39 = vst [vmem:[#allocation2 + $0x28] sm:$0xff] 0.0
      %40 = vst [vmem:[#allocation2 + $0x30] sm:$0xff] 0.0
      %41 = vst [vmem:[#allocation2 + $0x38] sm:$0xff] 0.0
      %42 = vst [vmem:[#allocation2 + $0x40] sm:$0xff] 0.0
      %43 = vst [vmem:[#allocation2 + $0x48] sm:$0xff] 0.0
      %44 = vst [vmem:[#allocation2 + $0x50] sm:$0xff] 0.0
      %45 = vst [vmem:[#allocation2 + $0x58] sm:$0xff] 0.0
      %46 = vst [vmem:[#allocation2 + $0x60] sm:$0xff] 0.0
      %47 = vst [vmem:[#allocation2 + $0x68] sm:$0xff] 0.0
      %48 = vst [vmem:[#allocation2 + $0x70] sm:$0xff] 0.0
      %49 = vst [vmem:[#allocation2 + $0x78] sm:$0xff] 0.0
    $region25: #{bernnet_forward.5} parent=1 // pred_fallthru
      _
    %v50 = vld [vmem:[#allocation2] sm:$0xff]
    %v51 = vld [vmem:[#allocation2 + $0x8] sm:$0xff]
    %v52 = vld [vmem:[#allocation2 + $0x10] sm:$0xff]
    %v53 = vld [vmem:[#allocation2 + $0x18] sm:$0xff]
    %v54 = vld [vmem:[#allocation2 + $0x20] sm:$0xff]
    %v55 = vld [vmem:[#allocation2 + $0x28] sm:$0xff]
    %v56 = vld [vmem:[#allocation2 + $0x30] sm:$0xff]
    %v57 = vld [vmem:[#allocation2 + $0x38] sm:$0xff]
    %v58 = vld [vmem:[#allocation2 + $0x40] sm:$0xff]
    %v59 = vld [vmem:[#allocation2 + $0x48] sm:$0xff]
    %v60 = vld [vmem:[#allocation2 + $0x50] sm:$0xff]
    %v61 = vld [vmem:[#allocation2 + $0x58] sm:$0xff]
    %v62 = vld [vmem:[#allocation2 + $0x60] sm:$0xff]
    %v63 = vld [vmem:[#allocation2 + $0x68] sm:$0xff]
    %v64 = vld [vmem:[#allocation2 + $0x70] sm:$0xff]
    %v65 = vld [vmem:[#allocation2 + $0x78] sm:$0xff]
    %v66 = vld [vmem:[%s1] sm:$0xf]
    %v67 = vld [vmem:[%s1 + $0x4] sm:$0xf]
    %v68 = vld [vmem:[%s1 + $0x8] sm:$0xf]
    %v69 = vld [vmem:[%s1 + $0xc] sm:$0xf]
    %v70 = vld [vmem:[%s1 + $0x10] sm:$0xf]
    %v71 = vld [vmem:[%s1 + $0x14] sm:$0xf]
    %v72 = vld [vmem:[%s1 + $0x18] sm:$0xf]
    %v73 = vld [vmem:[%s1 + $0x1c] sm:$0xf]
    %v74 = vld [vmem:[%s1 + $0x20] sm:$0xf]
    %v75 = vld [vmem:[%s1 + $0x24] sm:$0xf]
    %v76 = vld [vmem:[%s1 + $0x28] sm:$0xf]
    %v77 = vld [vmem:[%s1 + $0x2c] sm:$0xf]
    %v78 = vld [vmem:[%s1 + $0x30] sm:$0xf]
    %v79 = vld [vmem:[%s1 + $0x34] sm:$0xf]
    %v80 = vld [vmem:[%s1 + $0x38] sm:$0xf]
    %v81 = vld [vmem:[%s1 + $0x3c] sm:$0xf]
    %v82 = vld [vmem:[%s2] sm:$0xff]
    %v83 = vld [vmem:[%s2 + $0x8] sm:$0xff]
    %v84 = vld [vmem:[%s2 + $0x10] sm:$0xff]
    %v85 = vld [vmem:[%s2 + $0x18] sm:$0xff]
    %v86 = vld [vmem:[%s2 + $0x20] sm:$0xff]
    %v87 = vld [vmem:[%s2 + $0x28] sm:$0xff]
    %v88 = vld [vmem:[%s2 + $0x30] sm:$0xff]
    %v89 = vld [vmem:[%s2 + $0x38] sm:$0xff]
    %v90 = vld [vmem:[%s2 + $0x40] sm:$0xff]
    %v91 = vld [vmem:[%s2 + $0x48] sm:$0xff]
    %v92 = vld [vmem:[%s2 + $0x50] sm:$0xff]
    %v93 = vld [vmem:[%s2 + $0x58] sm:$0xff]
    %v94 = vld [vmem:[%s2 + $0x60] sm:$0xff]
    %v95 = vld [vmem:[%s2 + $0x68] sm:$0xff]
    %v96 = vld [vmem:[%s2 + $0x70] sm:$0xff]
    %v97 = vld [vmem:[%s2 + $0x78] sm:$0xff]
    %v98 = vpack.c.bf16 %v83, %v82
    %v99 = vpack.c.bf16 %v85, %v84
    %v100 = vpack.c.bf16 %v87, %v86
    %v101 = vpack.c.bf16 %v89, %v88
    %v102 = vpack.c.bf16 %v91, %v90
    %v103 = vpack.c.bf16 %v93, %v92
    %v104 = vpack.c.bf16 %v95, %v94
    %v105 = vpack.c.bf16 %v97, %v96
    %v122 = vunpack.c.l.b16 %v66
    %v123 = vunpack.c.l.b16 %v67
    %v124 = vunpack.c.l.b16 %v68
    %v125 = vunpack.c.l.b16 %v69
    %v126 = vunpack.c.l.b16 %v70
    %v127 = vunpack.c.l.b16 %v71
    %v128 = vunpack.c.l.b16 %v72
    %v129 = vunpack.c.l.b16 %v73
    %v130 = vunpack.c.l.b16 %v74
    %v131 = vunpack.c.l.b16 %v75
    %v132 = vunpack.c.l.b16 %v76
    %v133 = vunpack.c.l.b16 %v77
    %v134 = vunpack.c.l.b16 %v78
    %v135 = vunpack.c.l.b16 %v79
    %v136 = vunpack.c.l.b16 %v80
    %v137 = vunpack.c.l.b16 %v81
    %v138 = vpack.c.b16 %v123, %v122
    %v139 = vpack.c.b16 %v125, %v124
    %v140 = vpack.c.b16 %v127, %v126
    %v141 = vpack.c.b16 %v129, %v128
    %v142 = vpack.c.b16 %v131, %v130
    %v143 = vpack.c.b16 %v133, %v132
    %v144 = vpack.c.b16 %v135, %v134
    %v145 = vpack.c.b16 %v137, %v136
    %154 = vmatpush.bf16.msra.mxu0 %v105
    %155 = vmatpush.bf16.msra.mxu0 %v104
    %156 = vmatpush.bf16.msra.mxu0 %v103
    %157 = vmatpush.bf16.msra.mxu0 %v102
    %158 = vmatpush.bf16.msra.mxu0 %v101
    %159 = vmatpush.bf16.msra.mxu0 %v100
    %160 = vmatpush.bf16.msra.mxu0 %v99
    %161 = vmatpush.bf16.msra.mxu0 %v98
    %162 = vmatmul.bf16.gmra.mxu0 %v138
    %v163 = vpop.f32.mrf.mxu0
    %v164 = vadd.f32 0.0, %v163
    %v165 = vpop.f32.mrf.mxu0
    %v166 = vadd.f32 0.0, %v165
    %167 = vmatmul.bf16.gmra.mxu0 %v139
    %v168 = vpop.f32.mrf.mxu0
    %v169 = vadd.f32 0.0, %v168
    %v170 = vpop.f32.mrf.mxu0
    %v171 = vadd.f32 0.0, %v170
    %172 = vmatmul.bf16.gmra.mxu0 %v140
    %v173 = vpop.f32.mrf.mxu0
    %v174 = vadd.f32 0.0, %v173
    %v175 = vpop.f32.mrf.mxu0
    %v176 = vadd.f32 0.0, %v175
    %177 = vmatmul.bf16.gmra.mxu0 %v141
    %v178 = vpop.f32.mrf.mxu0
    %v179 = vadd.f32 0.0, %v178
    %v180 = vpop.f32.mrf.mxu0
    %v181 = vadd.f32 0.0, %v180
    %182 = vmatmul.bf16.gmra.mxu0 %v142
    %v183 = vpop.f32.mrf.mxu0
    %v184 = vadd.f32 0.0, %v183
    %v185 = vpop.f32.mrf.mxu0
    %v186 = vadd.f32 0.0, %v185
    %187 = vmatmul.bf16.gmra.mxu0 %v143
    %v188 = vpop.f32.mrf.mxu0
    %v189 = vadd.f32 0.0, %v188
    %v190 = vpop.f32.mrf.mxu0
    %v191 = vadd.f32 0.0, %v190
    %192 = vmatmul.bf16.gmra.mxu0 %v144
    %v193 = vpop.f32.mrf.mxu0
    %v194 = vadd.f32 0.0, %v193
    %v195 = vpop.f32.mrf.mxu0
    %v196 = vadd.f32 0.0, %v195
    %197 = vmatmul.bf16.gmra.mxu0 %v145
    %v198 = vpop.f32.mrf.mxu0
    %v199 = vadd.f32 0.0, %v198
    %v200 = vpop.f32.mrf.mxu0
    %v201 = vadd.f32 0.0, %v200
    %202 = vdwg.mxu0
    %v203 = vadd.f32 %v50, %v164
    %v204 = vadd.f32 %v51, %v166
    %v205 = vadd.f32 %v52, %v169
    %v206 = vadd.f32 %v53, %v171
    %v207 = vadd.f32 %v54, %v174
    %v208 = vadd.f32 %v55, %v176
    %v209 = vadd.f32 %v56, %v179
    %v210 = vadd.f32 %v57, %v181
    %v211 = vadd.f32 %v58, %v184
    %v212 = vadd.f32 %v59, %v186
    %v213 = vadd.f32 %v60, %v189
    %v214 = vadd.f32 %v61, %v191
    %v215 = vadd.f32 %v62, %v194
    %v216 = vadd.f32 %v63, %v196
    %v217 = vadd.f32 %v64, %v199
    %v218 = vadd.f32 %v65, %v201
    %219 = vst [vmem:[#allocation2] sm:$0xff] %v203
    %220 = vst [vmem:[#allocation2 + $0x8] sm:$0xff] %v204
    %221 = vst [vmem:[#allocation2 + $0x10] sm:$0xff] %v205
    %222 = vst [vmem:[#allocation2 + $0x18] sm:$0xff] %v206
    %223 = vst [vmem:[#allocation2 + $0x20] sm:$0xff] %v207
    %224 = vst [vmem:[#allocation2 + $0x28] sm:$0xff] %v208
    %225 = vst [vmem:[#allocation2 + $0x30] sm:$0xff] %v209
    %226 = vst [vmem:[#allocation2 + $0x38] sm:$0xff] %v210
    %227 = vst [vmem:[#allocation2 + $0x40] sm:$0xff] %v211
    %228 = vst [vmem:[#allocation2 + $0x48] sm:$0xff] %v212
    %229 = vst [vmem:[#allocation2 + $0x50] sm:$0xff] %v213
    %230 = vst [vmem:[#allocation2 + $0x58] sm:$0xff] %v214
    %231 = vst [vmem:[#allocation2 + $0x60] sm:$0xff] %v215
    %232 = vst [vmem:[#allocation2 + $0x68] sm:$0xff] %v216
    %233 = vst [vmem:[#allocation2 + $0x70] sm:$0xff] %v217
    %234 = vst [vmem:[#allocation2 + $0x78] sm:$0xff] %v218
    // Predicated region
    $region26: #{bernnet_forward.5} parent=1 // pred_check
      %p235 = pneg %p30
    $region27: #{bernnet_forward.5} parent=1 // pred_check_branch
      %237 = sbr.rel (%p235) target = $region29
    $region28: #{bernnet_forward.5} parent=1 // pred_region
      %v238 = vld [vmem:[#allocation2] sm:$0xff]
      %v239 = vld [vmem:[#allocation2 + $0x8] sm:$0xff]
      %v240 = vld [vmem:[#allocation2 + $0x10] sm:$0xff]
      %v241 = vld [vmem:[#allocation2 + $0x18] sm:$0xff]
      %v242 = vld [vmem:[#allocation2 + $0x20] sm:$0xff]
      %v243 = vld [vmem:[#allocation2 + $0x28] sm:$0xff]
      %v244 = vld [vmem:[#allocation2 + $0x30] sm:$0xff]
      %v245 = vld [vmem:[#allocation2 + $0x38] sm:$0xff]
      %v246 = vld [vmem:[#allocation2 + $0x40] sm:$0xff]
      %v247 = vld [vmem:[#allocation2 + $0x48] sm:$0xff]
      %v248 = vld [vmem:[#allocation2 + $0x50] sm:$0xff]
      %v249 = vld [vmem:[#allocation2 + $0x58] sm:$0xff]
      %v250 = vld [vmem:[#allocation2 + $0x60] sm:$0xff]
      %v251 = vld [vmem:[#allocation2 + $0x68] sm:$0xff]
      %v252 = vld [vmem:[#allocation2 + $0x70] sm:$0xff]
      %v253 = vld [vmem:[#allocation2 + $0x78] sm:$0xff]
      %v254 = vld [vmem:[%s3] sm:$0xff]
      %v255 = vld [vmem:[%s3 + $0x8] sm:$0xff]
      %v256 = vld [vmem:[%s3 + $0x10] sm:$0xff]
      %v257 = vld [vmem:[%s3 + $0x18] sm:$0xff]
      %v258 = vld [vmem:[%s3 + $0x20] sm:$0xff]
      %v259 = vld [vmem:[%s3 + $0x28] sm:$0xff]
      %v260 = vld [vmem:[%s3 + $0x30] sm:$0xff]
      %v261 = vld [vmem:[%s3 + $0x38] sm:$0xff]
      %v262 = vld [vmem:[%s3 + $0x40] sm:$0xff]
      %v263 = vld [vmem:[%s3 + $0x48] sm:$0xff]
      %v264 = vld [vmem:[%s3 + $0x50] sm:$0xff]
      %v265 = vld [vmem:[%s3 + $0x58] sm:$0xff]
      %v266 = vld [vmem:[%s3 + $0x60] sm:$0xff]
      %v267 = vld [vmem:[%s3 + $0x68] sm:$0xff]
      %v268 = vld [vmem:[%s3 + $0x70] sm:$0xff]
      %v269 = vld [vmem:[%s3 + $0x78] sm:$0xff]
      %v270 = vmul.f32 %v254, 2.0
      %v271 = vmul.f32 %v255, 2.0
      %v272 = vmul.f32 %v256, 2.0
      %v273 = vmul.f32 %v257, 2.0
      %v274 = vmul.f32 %v258, 2.0
      %v275 = vmul.f32 %v259, 2.0
      %v276 = vmul.f32 %v260, 2.0
      %v277 = vmul.f32 %v261, 2.0
      %v278 = vmul.f32 %v262, 2.0
      %v279 = vmul.f32 %v263, 2.0
      %v280 = vmul.f32 %v264, 2.0
      %v281 = vmul.f32 %v265, 2.0
      %v282 = vmul.f32 %v266, 2.0
      %v283 = vmul.f32 %v267, 2.0
      %v284 = vmul.f32 %v268, 2.0
      %v285 = vmul.f32 %v269, 2.0
      %v286 = vsub.f32 %v270, %v238
      %v287 = vsub.f32 %v271, %v239
      %v288 = vsub.f32 %v272, %v240
      %v289 = vsub.f32 %v273, %v241
      %v290 = vsub.f32 %v274, %v242
      %v291 = vsub.f32 %v275, %v243
      %v292 = vsub.f32 %v276, %v244
      %v293 = vsub.f32 %v277, %v245
      %v294 = vsub.f32 %v278, %v246
      %v295 = vsub.f32 %v279, %v247
      %v296 = vsub.f32 %v280, %v248
      %v297 = vsub.f32 %v281, %v249
      %v298 = vsub.f32 %v282, %v250
      %v299 = vsub.f32 %v283, %v251
      %v300 = vsub.f32 %v284, %v252
      %v301 = vsub.f32 %v285, %v253
      %s302 = sld [smem:[#allocation3 + $0x3]]
      %v303 = vstv %s302
      %v304 = vmul.f32 %v303, %v238
      %v305 = vmul.f32 %v303, %v239
      %v306 = vmul.f32 %v303, %v240
      %v307 = vmul.f32 %v303, %v241
      %v308 = vmul.f32 %v303, %v242
      %v309 = vmul.f32 %v303, %v243
      %v310 = vmul.f32 %v303, %v244
      %v311 = vmul.f32 %v303, %v245
      %v312 = vmul.f32 %v303, %v246
      %v313 = vmul.f32 %v303, %v247
      %v314 = vmul.f32 %v303, %v248
      %v315 = vmul.f32 %v303, %v249
      %v316 = vmul.f32 %v303, %v250
      %v317 = vmul.f32 %v303, %v251
      %v318 = vmul.f32 %v303, %v252
      %v319 = vmul.f32 %v303, %v253
      %s320 = sld [smem:[#allocation3 + $0x2]]
      %v321 = vstv %s320
      %v322 = vmul.f32 %v321, %v286
      %v323 = vmul.f32 %v321, %v287
      %v324 = vmul.f32 %v321, %v288
      %v325 = vmul.f32 %v321, %v289
      %v326 = vmul.f32 %v321, %v290
      %v327 = vmul.f32 %v321, %v291
      %v328 = vmul.f32 %v321, %v292
      %v329 = vmul.f32 %v321, %v293
      %v330 = vmul.f32 %v321, %v294
      %v331 = vmul.f32 %v321, %v295
      %v332 = vmul.f32 %v321, %v296
      %v333 = vmul.f32 %v321, %v297
      %v334 = vmul.f32 %v321, %v298
      %v335 = vmul.f32 %v321, %v299
      %v336 = vmul.f32 %v321, %v300
      %v337 = vmul.f32 %v321, %v301
      %v338 = vadd.f32 %v304, %v322
      %v339 = vadd.f32 %v305, %v323
      %v340 = vadd.f32 %v306, %v324
      %v341 = vadd.f32 %v307, %v325
      %v342 = vadd.f32 %v308, %v326
      %v343 = vadd.f32 %v309, %v327
      %v344 = vadd.f32 %v310, %v328
      %v345 = vadd.f32 %v311, %v329
      %v346 = vadd.f32 %v312, %v330
      %v347 = vadd.f32 %v313, %v331
      %v348 = vadd.f32 %v314, %v332
      %v349 = vadd.f32 %v315, %v333
      %v350 = vadd.f32 %v316, %v334
      %v351 = vadd.f32 %v317, %v335
      %v352 = vadd.f32 %v318, %v336
      %v353 = vadd.f32 %v319, %v337
      %354 = vst [vmem:[%s4] sm:$0xff] %v286
      %355 = vst [vmem:[%s4 + $0x10] sm:$0xff] %v287
      %356 = vst [vmem:[%s4 + $0x20] sm:$0xff] %v288
      %357 = vst [vmem:[%s4 + $0x30] sm:$0xff] %v289
      %358 = vst [vmem:[%s4 + $0x40] sm:$0xff] %v290
      %359 = vst [vmem:[%s4 + $0x50] sm:$0xff] %v291
      %360 = vst [vmem:[%s4 + $0x60] sm:$0xff] %v292
      %361 = vst [vmem:[%s4 + $0x70] sm:$0xff] %v293
      %362 = vst [vmem:[%s4 + $0x80] sm:$0xff] %v294
      %363 = vst [vmem:[%s4 + $0x90] sm:$0xff] %v295
      %364 = vst [vmem:[%s4 + $0xa0] sm:$0xff] %v296
      %365 = vst [vmem:[%s4 + $0xb0] sm:$0xff] %v297
      %366 = vst [vmem:[%s4 + $0xc0] sm:$0xff] %v298
      %367 = vst [vmem:[%s4 + $0xd0] sm:$0xff] %v299
      %368 = vst [vmem:[%s4 + $0xe0] sm:$0xff] %v300
      %369 = vst [vmem:[%s4 + $0xf0] sm:$0xff] %v301
      %370 = vst [vmem:[%s4 + $0x8] sm:$0xff] %v338
      %371 = vst [vmem:[%s4 + $0x18] sm:$0xff] %v339
      %372 = vst [vmem:[%s4 + $0x28] sm:$0xff] %v340
      %373 = vst [vmem:[%s4 + $0x38] sm:$0xff] %v341
      %374 = vst [vmem:[%s4 + $0x48] sm:$0xff] %v342
      %375 = vst [vmem:[%s4 + $0x58] sm:$0xff] %v343
      %376 = vst [vmem:[%s4 + $0x68] sm:$0xff] %v344
      %377 = vst [vmem:[%s4 + $0x78] sm:$0xff] %v345
      %378 = vst [vmem:[%s4 + $0x88] sm:$0xff] %v346
      %379 = vst [vmem:[%s4 + $0x98] sm:$0xff] %v347
      %380 = vst [vmem:[%s4 + $0xa8] sm:$0xff] %v348
      %381 = vst [vmem:[%s4 + $0xb8] sm:$0xff] %v349
      %382 = vst [vmem:[%s4 + $0xc8] sm:$0xff] %v350
      %383 = vst [vmem:[%s4 + $0xd8] sm:$0xff] %v351
      %384 = vst [vmem:[%s4 + $0xe8] sm:$0xff] %v352
      %385 = vst [vmem:[%s4 + $0xf8] sm:$0xff] %v353
    $region29: #{bernnet_forward.5} parent=1 // pred_fallthru
      _
    // Predicated region
    $region30: #{bernnet_forward.5} parent=1 // pred_check
      _
    $region31: #{bernnet_forward.5} parent=1 // pred_check_branch
      %387 = sbr.rel (0) target = $region33
    $region32: #{bernnet_forward.5} parent=1 // pred_region
      _
    $region33: #{bernnet_forward.5} parent=1 // pred_fallthru
      _
    // Predicated region
    $region34: #{bernnet_forward.5} parent=1 // pred_check
      _
    $region35: #{bernnet_forward.5} parent=1 // pred_check_branch
      %389 = sbr.rel (0) target = $region37
    $region36: #{bernnet_forward.5} parent=1 // pred_region
      _
    $region37: #{bernnet_forward.5} parent=1 // pred_fallthru
      _
    %390 = vsyncpa [#allocation4], 1

// kernel: bernnet_forward.6
$region0: #{bernnet_forward.6}
  #allocation0 [shape = 'u32[]', space=smem, size = 0x4, offset = 0x4, fixed_abs, tag = 'smem constant byte address 0x4 - core index']
  #allocation1 [shape = 'u32[72,128]{1,0:T(1,128)}', space=vmem, size = 0x9000, scoped, tag = 'internal scratch']
  #allocation2 [shape = 'f32[128,256]{1,0:T(8,128)}', space=vmem, size = 0x20000, scoped, tag = 'scratch operand']
  %s0 = inlined_call_operand.vmem [shape: f32[4], index: 0, kind: input, shape index: {}]
  %s1 = inlined_call_operand.vmem [shape: bf16[128,128], index: 1, kind: input, shape index: {}]
  %s2 = inlined_call_operand.vmem [shape: f32[128,256], index: 2, kind: input, shape index: {}, may-alias: {2,3}]
  %s3 = inlined_call_operand.vmem [shape: f32[128,256], index: 3, kind: input, shape index: {}, may-alias: {2,3}]
  %s4 = inlined_call_operand.vmem [shape: f32[128,256], index: 4, kind: output, shape index: {}]
  %s5 = sld [smem:[#allocation0]]
  $region38: #{bernnet_forward.6} parent=0
    _
  %s7 = ssub.s32 1, %s5
  %s8 = scalar_select 0, %s7, %s5
  $region1: #{bernnet_forward.6} parent=0
    #allocation3 [shape = 'u8[512]{0}', space=smem, size = 0x200, scoped, tag = 'input window, operand 0, single buffered']
    #allocation4 [shape = 's32[1]{0}', space=sflag, size = 0x4, scoped, tag = 'scoped memory for bernnet_forward.6']
    %9 = vsyncpa [#allocation4], 0
    // Predicated region
    $region2: #{bernnet_forward.6} parent=1 // pred_check
      _
    $region3: #{bernnet_forward.6} parent=1 // pred_check_branch
      %11 = sbr.rel (0) target = $region5
    $region4: #{bernnet_forward.6} parent=1 // pred_region
      %13 = vsyncadd [#allocation4], 0
      %s15 = sshll.u32 %s0, 4
      %s16 = int_to_ptr.vmem [resolvable:$true] %s15
      %18 = dma.vmem_to_smem %s16, 16, [#allocation3], [#allocation4]
    $region5: #{bernnet_forward.6} parent=1 // pred_fallthru
      _
    // Predicated region
    $region6: #{bernnet_forward.6} parent=1 // pred_check
      _
    $region7: #{bernnet_forward.6} parent=1 // pred_check_branch
      %20 = sbr.rel (0) target = $region9
    $region8: #{bernnet_forward.6} parent=1 // pred_region
      _
    $region9: #{bernnet_forward.6} parent=1 // pred_fallthru
      _
    // Predicated region
    $region10: #{bernnet_forward.6} parent=1 // pred_check
      _
    $region11: #{bernnet_forward.6} parent=1 // pred_check_branch
      %22 = sbr.rel (0) target = $region13
    $region12: #{bernnet_forward.6} parent=1 // pred_region
      _
    $region13: #{bernnet_forward.6} parent=1 // pred_fallthru
      _
    // Predicated region
    $region14: #{bernnet_forward.6} parent=1 // pred_check
      _
    $region15: #{bernnet_forward.6} parent=1 // pred_check_branch
      %24 = sbr.rel (0) target = $region17
    $region16: #{bernnet_forward.6} parent=1 // pred_region
      _
    $region17: #{bernnet_forward.6} parent=1 // pred_fallthru
      _
    // Predicated region
    $region18: #{bernnet_forward.6} parent=1 // pred_check
      _
    $region19: #{bernnet_forward.6} parent=1 // pred_check_branch
      %26 = sbr.rel (0) target = $region21
    $region20: #{bernnet_forward.6} parent=1 // pred_region
      %28 = dma.done [#allocation4], 16
    $region21: #{bernnet_forward.6} parent=1 // pred_fallthru
      _
    %29 = sfence
    %p30 = scmp.eq.s32.totalorder 0, 0
    // Predicated region
    $region22: #{bernnet_forward.6} parent=1 // pred_check
      %p31 = pneg %p30
    $region23: #{bernnet_forward.6} parent=1 // pred_check_branch
      %33 = sbr.rel (%p31) target = $region25
    $region24: #{bernnet_forward.6} parent=1 // pred_region
      %34 = vst [vmem:[#allocation2] sm:$0xff] 0.0
      %35 = vst [vmem:[#allocation2 + $0x8] sm:$0xff] 0.0
      %36 = vst [vmem:[#allocation2 + $0x10] sm:$0xff] 0.0
      %37 = vst [vmem:[#allocation2 + $0x18] sm:$0xff] 0.0
      %38 = vst [vmem:[#allocation2 + $0x20] sm:$0xff] 0.0
      %39 = vst [vmem:[#allocation2 + $0x28] sm:$0xff] 0.0
      %40 = vst [vmem:[#allocation2 + $0x30] sm:$0xff] 0.0
      %41 = vst [vmem:[#allocation2 + $0x38] sm:$0xff] 0.0
      %42 = vst [vmem:[#allocation2 + $0x40] sm:$0xff] 0.0
      %43 = vst [vmem:[#allocation2 + $0x48] sm:$0xff] 0.0
      %44 = vst [vmem:[#allocation2 + $0x50] sm:$0xff] 0.0
      %45 = vst [vmem:[#allocation2 + $0x58] sm:$0xff] 0.0
      %46 = vst [vmem:[#allocation2 + $0x60] sm:$0xff] 0.0
      %47 = vst [vmem:[#allocation2 + $0x68] sm:$0xff] 0.0
      %48 = vst [vmem:[#allocation2 + $0x70] sm:$0xff] 0.0
      %49 = vst [vmem:[#allocation2 + $0x78] sm:$0xff] 0.0
      %50 = vst [vmem:[#allocation2 + $0x80] sm:$0xff] 0.0
      %51 = vst [vmem:[#allocation2 + $0x88] sm:$0xff] 0.0
      %52 = vst [vmem:[#allocation2 + $0x90] sm:$0xff] 0.0
      %53 = vst [vmem:[#allocation2 + $0x98] sm:$0xff] 0.0
      %54 = vst [vmem:[#allocation2 + $0xa0] sm:$0xff] 0.0
      %55 = vst [vmem:[#allocation2 + $0xa8] sm:$0xff] 0.0
      %56 = vst [vmem:[#allocation2 + $0xb0] sm:$0xff] 0.0
      %57 = vst [vmem:[#allocation2 + $0xb8] sm:$0xff] 0.0
      %58 = vst [vmem:[#allocation2 + $0xc0] sm:$0xff] 0.0
      %59 = vst [vmem:[#allocation2 + $0xc8] sm:$0xff] 0.0
      %60 = vst [vmem:[#allocation2 + $0xd0] sm:$0xff] 0.0
      %61 = vst [vmem:[#allocation2 + $0xd8] sm:$0xff] 0.0
      %62 = vst [vmem:[#allocation2 + $0xe0] sm:$0xff] 0.0
      %63 = vst [vmem:[#allocation2 + $0xe8] sm:$0xff] 0.0
      %64 = vst [vmem:[#allocation2 + $0xf0] sm:$0xff] 0.0
      %65 = vst [vmem:[#allocation2 + $0xf8] sm:$0xff] 0.0
    $region25: #{bernnet_forward.6} parent=1 // pred_fallthru
      _
    %v66 = vld [vmem:[#allocation2] sm:$0xff]
    %v67 = vld [vmem:[#allocation2 + $0x8] sm:$0xff]
    %v68 = vld [vmem:[#allocation2 + $0x10] sm:$0xff]
    %v69 = vld [vmem:[#allocation2 + $0x18] sm:$0xff]
    %v70 = vld [vmem:[#allocation2 + $0x20] sm:$0xff]
    %v71 = vld [vmem:[#allocation2 + $0x28] sm:$0xff]
    %v72 = vld [vmem:[#allocation2 + $0x30] sm:$0xff]
    %v73 = vld [vmem:[#allocation2 + $0x38] sm:$0xff]
    %v74 = vld [vmem:[#allocation2 + $0x40] sm:$0xff]
    %v75 = vld [vmem:[#allocation2 + $0x48] sm:$0xff]
    %v76 = vld [vmem:[#allocation2 + $0x50] sm:$0xff]
    %v77 = vld [vmem:[#allocation2 + $0x58] sm:$0xff]
    %v78 = vld [vmem:[#allocation2 + $0x60] sm:$0xff]
    %v79 = vld [vmem:[#allocation2 + $0x68] sm:$0xff]
    %v80 = vld [vmem:[#allocation2 + $0x70] sm:$0xff]
    %v81 = vld [vmem:[#allocation2 + $0x78] sm:$0xff]
    %v82 = vld [vmem:[#allocation2 + $0x80] sm:$0xff]
    %v83 = vld [vmem:[#allocation2 + $0x88] sm:$0xff]
    %v84 = vld [vmem:[#allocation2 + $0x90] sm:$0xff]
    %v85 = vld [vmem:[#allocation2 + $0x98] sm:$0xff]
    %v86 = vld [vmem:[#allocation2 + $0xa0] sm:$0xff]
    %v87 = vld [vmem:[#allocation2 + $0xa8] sm:$0xff]
    %v88 = vld [vmem:[#allocation2 + $0xb0] sm:$0xff]
    %v89 = vld [vmem:[#allocation2 + $0xb8] sm:$0xff]
    %v90 = vld [vmem:[#allocation2 + $0xc0] sm:$0xff]
    %v91 = vld [vmem:[#allocation2 + $0xc8] sm:$0xff]
    %v92 = vld [vmem:[#allocation2 + $0xd0] sm:$0xff]
    %v93 = vld [vmem:[#allocation2 + $0xd8] sm:$0xff]
    %v94 = vld [vmem:[#allocation2 + $0xe0] sm:$0xff]
    %v95 = vld [vmem:[#allocation2 + $0xe8] sm:$0xff]
    %v96 = vld [vmem:[#allocation2 + $0xf0] sm:$0xff]
    %v97 = vld [vmem:[#allocation2 + $0xf8] sm:$0xff]
    %v98 = vld [vmem:[%s1] sm:$0xf]
    %v99 = vld [vmem:[%s1 + $0x4] sm:$0xf]
    %v100 = vld [vmem:[%s1 + $0x8] sm:$0xf]
    %v101 = vld [vmem:[%s1 + $0xc] sm:$0xf]
    %v102 = vld [vmem:[%s1 + $0x10] sm:$0xf]
    %v103 = vld [vmem:[%s1 + $0x14] sm:$0xf]
    %v104 = vld [vmem:[%s1 + $0x18] sm:$0xf]
    %v105 = vld [vmem:[%s1 + $0x1c] sm:$0xf]
    %v106 = vld [vmem:[%s1 + $0x20] sm:$0xf]
    %v107 = vld [vmem:[%s1 + $0x24] sm:$0xf]
    %v108 = vld [vmem:[%s1 + $0x28] sm:$0xf]
    %v109 = vld [vmem:[%s1 + $0x2c] sm:$0xf]
    %v110 = vld [vmem:[%s1 + $0x30] sm:$0xf]
    %v111 = vld [vmem:[%s1 + $0x34] sm:$0xf]
    %v112 = vld [vmem:[%s1 + $0x38] sm:$0xf]
    %v113 = vld [vmem:[%s1 + $0x3c] sm:$0xf]
    %v114 = vld [vmem:[%s2] sm:$0xff]
    %v115 = vld [vmem:[%s2 + $0x8] sm:$0xff]
    %v116 = vld [vmem:[%s2 + $0x10] sm:$0xff]
    %v117 = vld [vmem:[%s2 + $0x18] sm:$0xff]
    %v118 = vld [vmem:[%s2 + $0x20] sm:$0xff]
    %v119 = vld [vmem:[%s2 + $0x28] sm:$0xff]
    %v120 = vld [vmem:[%s2 + $0x30] sm:$0xff]
    %v121 = vld [vmem:[%s2 + $0x38] sm:$0xff]
    %v122 = vld [vmem:[%s2 + $0x40] sm:$0xff]
    %v123 = vld [vmem:[%s2 + $0x48] sm:$0xff]
    %v124 = vld [vmem:[%s2 + $0x50] sm:$0xff]
    %v125 = vld [vmem:[%s2 + $0x58] sm:$0xff]
    %v126 = vld [vmem:[%s2 + $0x60] sm:$0xff]
    %v127 = vld [vmem:[%s2 + $0x68] sm:$0xff]
    %v128 = vld [vmem:[%s2 + $0x70] sm:$0xff]
    %v129 = vld [vmem:[%s2 + $0x78] sm:$0xff]
    %v130 = vld [vmem:[%s2 + $0x80] sm:$0xff]
    %v131 = vld [vmem:[%s2 + $0x88] sm:$0xff]
    %v132 = vld [vmem:[%s2 + $0x90] sm:$0xff]
    %v133 = vld [vmem:[%s2 + $0x98] sm:$0xff]
    %v134 = vld [vmem:[%s2 + $0xa0] sm:$0xff]
    %v135 = vld [vmem:[%s2 + $0xa8] sm:$0xff]
    %v136 = vld [vmem:[%s2 + $0xb0] sm:$0xff]
    %v137 = vld [vmem:[%s2 + $0xb8] sm:$0xff]
    %v138 = vld [vmem:[%s2 + $0xc0] sm:$0xff]
    %v139 = vld [vmem:[%s2 + $0xc8] sm:$0xff]
    %v140 = vld [vmem:[%s2 + $0xd0] sm:$0xff]
    %v141 = vld [vmem:[%s2 + $0xd8] sm:$0xff]
    %v142 = vld [vmem:[%s2 + $0xe0] sm:$0xff]
    %v143 = vld [vmem:[%s2 + $0xe8] sm:$0xff]
    %v144 = vld [vmem:[%s2 + $0xf0] sm:$0xff]
    %v145 = vld [vmem:[%s2 + $0xf8] sm:$0xff]
    %v146 = vpack.c.bf16 %v116, %v114
    %v147 = vpack.c.bf16 %v117, %v115
    %v148 = vpack.c.bf16 %v120, %v118
    %v149 = vpack.c.bf16 %v121, %v119
    %v150 = vpack.c.bf16 %v124, %v122
    %v151 = vpack.c.bf16 %v125, %v123
    %v152 = vpack.c.bf16 %v128, %v126
    %v153 = vpack.c.bf16 %v129, %v127
    %v154 = vpack.c.bf16 %v132, %v130
    %v155 = vpack.c.bf16 %v133, %v131
    %v156 = vpack.c.bf16 %v136, %v134
    %v157 = vpack.c.bf16 %v137, %v135
    %v158 = vpack.c.bf16 %v140, %v138
    %v159 = vpack.c.bf16 %v141, %v139
    %v160 = vpack.c.bf16 %v144, %v142
    %v161 = vpack.c.bf16 %v145, %v143
    %v178 = vunpack.c.l.b16 %v98
    %v179 = vunpack.c.l.b16 %v99
    %v180 = vunpack.c.l.b16 %v100
    %v181 = vunpack.c.l.b16 %v101
    %v182 = vunpack.c.l.b16 %v102
    %v183 = vunpack.c.l.b16 %v103
    %v184 = vunpack.c.l.b16 %v104
    %v185 = vunpack.c.l.b16 %v105
    %v186 = vunpack.c.l.b16 %v106
    %v187 = vunpack.c.l.b16 %v107
    %v188 = vunpack.c.l.b16 %v108
    %v189 = vunpack.c.l.b16 %v109
    %v190 = vunpack.c.l.b16 %v110
    %v191 = vunpack.c.l.b16 %v111
    %v192 = vunpack.c.l.b16 %v112
    %v193 = vunpack.c.l.b16 %v113
    %v194 = vpack.c.b16 %v179, %v178
    %v195 = vpack.c.b16 %v181, %v180
    %v196 = vpack.c.b16 %v183, %v182
    %v197 = vpack.c.b16 %v185, %v184
    %v198 = vpack.c.b16 %v187, %v186
    %v199 = vpack.c.b16 %v189, %v188
    %v200 = vpack.c.b16 %v191, %v190
    %v201 = vpack.c.b16 %v193, %v192
    %210 = vmatpush.bf16.msra.mxu0 %v160
    %211 = vmatpush.bf16.msra.mxu0 %v158
    %212 = vmatpush.bf16.msra.mxu0 %v156
    %213 = vmatpush.bf16.msra.mxu0 %v154
    %214 = vmatpush.bf16.msra.mxu0 %v152
    %215 = vmatpush.bf16.msra.mxu0 %v150
    %216 = vmatpush.bf16.msra.mxu0 %v148
    %217 = vmatpush.bf16.msra.mxu0 %v146
    %218 = vmatmul.bf16.gmra.mxu0 %v194
    %v219 = vpop.f32.mrf.mxu0
    %v220 = vadd.f32 0.0, %v219
    %v221 = vpop.f32.mrf.mxu0
    %v222 = vadd.f32 0.0, %v221
    %223 = vmatmul.bf16.gmra.mxu0 %v195
    %v224 = vpop.f32.mrf.mxu0
    %v225 = vadd.f32 0.0, %v224
    %v226 = vpop.f32.mrf.mxu0
    %v227 = vadd.f32 0.0, %v226
    %228 = vmatmul.bf16.gmra.mxu0 %v196
    %v229 = vpop.f32.mrf.mxu0
    %v230 = vadd.f32 0.0, %v229
    %v231 = vpop.f32.mrf.mxu0
    %v232 = vadd.f32 0.0, %v231
    %233 = vmatmul.bf16.gmra.mxu0 %v197
    %v234 = vpop.f32.mrf.mxu0
    %v235 = vadd.f32 0.0, %v234
    %v236 = vpop.f32.mrf.mxu0
    %v237 = vadd.f32 0.0, %v236
    %238 = vmatmul.bf16.gmra.mxu0 %v198
    %v239 = vpop.f32.mrf.mxu0
    %v240 = vadd.f32 0.0, %v239
    %v241 = vpop.f32.mrf.mxu0
    %v242 = vadd.f32 0.0, %v241
    %243 = vmatmul.bf16.gmra.mxu0 %v199
    %v244 = vpop.f32.mrf.mxu0
    %v245 = vadd.f32 0.0, %v244
    %v246 = vpop.f32.mrf.mxu0
    %v247 = vadd.f32 0.0, %v246
    %248 = vmatmul.bf16.gmra.mxu0 %v200
    %v249 = vpop.f32.mrf.mxu0
    %v250 = vadd.f32 0.0, %v249
    %v251 = vpop.f32.mrf.mxu0
    %v252 = vadd.f32 0.0, %v251
    %253 = vmatmul.bf16.gmra.mxu0 %v201
    %v254 = vpop.f32.mrf.mxu0
    %v255 = vadd.f32 0.0, %v254
    %v256 = vpop.f32.mrf.mxu0
    %v257 = vadd.f32 0.0, %v256
    %258 = vdwg.mxu0
    %259 = vmatpush.bf16.msra.mxu0 %v161
    %260 = vmatpush.bf16.msra.mxu0 %v159
    %261 = vmatpush.bf16.msra.mxu0 %v157
    %262 = vmatpush.bf16.msra.mxu0 %v155
    %263 = vmatpush.bf16.msra.mxu0 %v153
    %264 = vmatpush.bf16.msra.mxu0 %v151
    %265 = vmatpush.bf16.msra.mxu0 %v149
    %266 = vmatpush.bf16.msra.mxu0 %v147
    %267 = vmatmul.bf16.gmra.mxu0 %v194
    %v268 = vpop.f32.mrf.mxu0
    %v269 = vadd.f32 0.0, %v268
    %v270 = vpop.f32.mrf.mxu0
    %v271 = vadd.f32 0.0, %v270
    %272 = vmatmul.bf16.gmra.mxu0 %v195
    %v273 = vpop.f32.mrf.mxu0
    %v274 = vadd.f32 0.0, %v273
    %v275 = vpop.f32.mrf.mxu0
    %v276 = vadd.f32 0.0, %v275
    %277 = vmatmul.bf16.gmra.mxu0 %v196
    %v278 = vpop.f32.mrf.mxu0
    %v279 = vadd.f32 0.0, %v278
    %v280 = vpop.f32.mrf.mxu0
    %v281 = vadd.f32 0.0, %v280
    %282 = vmatmul.bf16.gmra.mxu0 %v197
    %v283 = vpop.f32.mrf.mxu0
    %v284 = vadd.f32 0.0, %v283
    %v285 = vpop.f32.mrf.mxu0
    %v286 = vadd.f32 0.0, %v285
    %287 = vmatmul.bf16.gmra.mxu0 %v198
    %v288 = vpop.f32.mrf.mxu0
    %v289 = vadd.f32 0.0, %v288
    %v290 = vpop.f32.mrf.mxu0
    %v291 = vadd.f32 0.0, %v290
    %292 = vmatmul.bf16.gmra.mxu0 %v199
    %v293 = vpop.f32.mrf.mxu0
    %v294 = vadd.f32 0.0, %v293
    %v295 = vpop.f32.mrf.mxu0
    %v296 = vadd.f32 0.0, %v295
    %297 = vmatmul.bf16.gmra.mxu0 %v200
    %v298 = vpop.f32.mrf.mxu0
    %v299 = vadd.f32 0.0, %v298
    %v300 = vpop.f32.mrf.mxu0
    %v301 = vadd.f32 0.0, %v300
    %302 = vmatmul.bf16.gmra.mxu0 %v201
    %v303 = vpop.f32.mrf.mxu0
    %v304 = vadd.f32 0.0, %v303
    %v305 = vpop.f32.mrf.mxu0
    %v306 = vadd.f32 0.0, %v305
    %307 = vdwg.mxu0
    %v308 = vadd.f32 %v66, %v220
    %v309 = vadd.f32 %v67, %v269
    %v310 = vadd.f32 %v68, %v222
    %v311 = vadd.f32 %v69, %v271
    %v312 = vadd.f32 %v70, %v225
    %v313 = vadd.f32 %v71, %v274
    %v314 = vadd.f32 %v72, %v227
    %v315 = vadd.f32 %v73, %v276
    %v316 = vadd.f32 %v74, %v230
    %v317 = vadd.f32 %v75, %v279
    %v318 = vadd.f32 %v76, %v232
    %v319 = vadd.f32 %v77, %v281
    %v320 = vadd.f32 %v78, %v235
    %v321 = vadd.f32 %v79, %v284
    %v322 = vadd.f32 %v80, %v237
    %v323 = vadd.f32 %v81, %v286
    %v324 = vadd.f32 %v82, %v240
    %v325 = vadd.f32 %v83, %v289
    %v326 = vadd.f32 %v84, %v242
    %v327 = vadd.f32 %v85, %v291
    %v328 = vadd.f32 %v86, %v245
    %v329 = vadd.f32 %v87, %v294
    %v330 = vadd.f32 %v88, %v247
    %v331 = vadd.f32 %v89, %v296
    %v332 = vadd.f32 %v90, %v250
    %v333 = vadd.f32 %v91, %v299
    %v334 = vadd.f32 %v92, %v252
    %v335 = vadd.f32 %v93, %v301
    %v336 = vadd.f32 %v94, %v255
    %v337 = vadd.f32 %v95, %v304
    %v338 = vadd.f32 %v96, %v257
    %v339 = vadd.f32 %v97, %v306
    %340 = vst [vmem:[#allocation2] sm:$0xff] %v308
    %341 = vst [vmem:[#allocation2 + $0x8] sm:$0xff] %v309
    %342 = vst [vmem:[#allocation2 + $0x10] sm:$0xff] %v310
    %343 = vst [vmem:[#allocation2 + $0x18] sm:$0xff] %v311
    %344 = vst [vmem:[#allocation2 + $0x20] sm:$0xff] %v312
    %345 = vst [vmem:[#allocation2 + $0x28] sm:$0xff] %v313
    %346 = vst [vmem:[#allocation2 + $0x30] sm:$0xff] %v314
    %347 = vst [vmem:[#allocation2 + $0x38] sm:$0xff] %v315
    %348 = vst [vmem:[#allocation2 + $0x40] sm:$0xff] %v316
    %349 = vst [vmem:[#allocation2 + $0x48] sm:$0xff] %v317
    %350 = vst [vmem:[#allocation2 + $0x50] sm:$0xff] %v318
    %351 = vst [vmem:[#allocation2 + $0x58] sm:$0xff] %v319
    %352 = vst [vmem:[#allocation2 + $0x60] sm:$0xff] %v320
    %353 = vst [vmem:[#allocation2 + $0x68] sm:$0xff] %v321
    %354 = vst [vmem:[#allocation2 + $0x70] sm:$0xff] %v322
    %355 = vst [vmem:[#allocation2 + $0x78] sm:$0xff] %v323
    %356 = vst [vmem:[#allocation2 + $0x80] sm:$0xff] %v324
    %357 = vst [vmem:[#allocation2 + $0x88] sm:$0xff] %v325
    %358 = vst [vmem:[#allocation2 + $0x90] sm:$0xff] %v326
    %359 = vst [vmem:[#allocation2 + $0x98] sm:$0xff] %v327
    %360 = vst [vmem:[#allocation2 + $0xa0] sm:$0xff] %v328
    %361 = vst [vmem:[#allocation2 + $0xa8] sm:$0xff] %v329
    %362 = vst [vmem:[#allocation2 + $0xb0] sm:$0xff] %v330
    %363 = vst [vmem:[#allocation2 + $0xb8] sm:$0xff] %v331
    %364 = vst [vmem:[#allocation2 + $0xc0] sm:$0xff] %v332
    %365 = vst [vmem:[#allocation2 + $0xc8] sm:$0xff] %v333
    %366 = vst [vmem:[#allocation2 + $0xd0] sm:$0xff] %v334
    %367 = vst [vmem:[#allocation2 + $0xd8] sm:$0xff] %v335
    %368 = vst [vmem:[#allocation2 + $0xe0] sm:$0xff] %v336
    %369 = vst [vmem:[#allocation2 + $0xe8] sm:$0xff] %v337
    %370 = vst [vmem:[#allocation2 + $0xf0] sm:$0xff] %v338
    %371 = vst [vmem:[#allocation2 + $0xf8] sm:$0xff] %v339
    // Predicated region
    $region26: #{bernnet_forward.6} parent=1 // pred_check
      %p372 = pneg %p30
    $region27: #{bernnet_forward.6} parent=1 // pred_check_branch
      %374 = sbr.rel (%p372) target = $region29
    $region28: #{bernnet_forward.6} parent=1 // pred_region
      %v375 = vld [vmem:[#allocation2] sm:$0xff]
      %v376 = vld [vmem:[#allocation2 + $0x8] sm:$0xff]
      %v377 = vld [vmem:[#allocation2 + $0x10] sm:$0xff]
      %v378 = vld [vmem:[#allocation2 + $0x18] sm:$0xff]
      %v379 = vld [vmem:[#allocation2 + $0x20] sm:$0xff]
      %v380 = vld [vmem:[#allocation2 + $0x28] sm:$0xff]
      %v381 = vld [vmem:[#allocation2 + $0x30] sm:$0xff]
      %v382 = vld [vmem:[#allocation2 + $0x38] sm:$0xff]
      %v383 = vld [vmem:[#allocation2 + $0x40] sm:$0xff]
      %v384 = vld [vmem:[#allocation2 + $0x48] sm:$0xff]
      %v385 = vld [vmem:[#allocation2 + $0x50] sm:$0xff]
      %v386 = vld [vmem:[#allocation2 + $0x58] sm:$0xff]
      %v387 = vld [vmem:[#allocation2 + $0x60] sm:$0xff]
      %v388 = vld [vmem:[#allocation2 + $0x68] sm:$0xff]
      %v389 = vld [vmem:[#allocation2 + $0x70] sm:$0xff]
      %v390 = vld [vmem:[#allocation2 + $0x78] sm:$0xff]
      %v391 = vld [vmem:[#allocation2 + $0x80] sm:$0xff]
      %v392 = vld [vmem:[#allocation2 + $0x88] sm:$0xff]
      %v393 = vld [vmem:[#allocation2 + $0x90] sm:$0xff]
      %v394 = vld [vmem:[#allocation2 + $0x98] sm:$0xff]
      %v395 = vld [vmem:[#allocation2 + $0xa0] sm:$0xff]
      %v396 = vld [vmem:[#allocation2 + $0xa8] sm:$0xff]
      %v397 = vld [vmem:[#allocation2 + $0xb0] sm:$0xff]
      %v398 = vld [vmem:[#allocation2 + $0xb8] sm:$0xff]
      %v399 = vld [vmem:[#allocation2 + $0xc0] sm:$0xff]
      %v400 = vld [vmem:[#allocation2 + $0xc8] sm:$0xff]
      %v401 = vld [vmem:[#allocation2 + $0xd0] sm:$0xff]
      %v402 = vld [vmem:[#allocation2 + $0xd8] sm:$0xff]
      %v403 = vld [vmem:[#allocation2 + $0xe0] sm:$0xff]
      %v404 = vld [vmem:[#allocation2 + $0xe8] sm:$0xff]
      %v405 = vld [vmem:[#allocation2 + $0xf0] sm:$0xff]
      %v406 = vld [vmem:[#allocation2 + $0xf8] sm:$0xff]
      %v407 = vld [vmem:[%s3] sm:$0xff]
      %v408 = vld [vmem:[%s3 + $0x10] sm:$0xff]
      %v409 = vld [vmem:[%s3 + $0x20] sm:$0xff]
      %v410 = vld [vmem:[%s3 + $0x30] sm:$0xff]
      %v411 = vld [vmem:[%s3 + $0x40] sm:$0xff]
      %v412 = vld [vmem:[%s3 + $0x50] sm:$0xff]
      %v413 = vld [vmem:[%s3 + $0x60] sm:$0xff]
      %v414 = vld [vmem:[%s3 + $0x70] sm:$0xff]
      %v415 = vld [vmem:[%s3 + $0x80] sm:$0xff]
      %v416 = vld [vmem:[%s3 + $0x90] sm:$0xff]
      %v417 = vld [vmem:[%s3 + $0xa0] sm:$0xff]
      %v418 = vld [vmem:[%s3 + $0xb0] sm:$0xff]
      %v419 = vld [vmem:[%s3 + $0xc0] sm:$0xff]
      %v420 = vld [vmem:[%s3 + $0xd0] sm:$0xff]
      %v421 = vld [vmem:[%s3 + $0xe0] sm:$0xff]
      %v422 = vld [vmem:[%s3 + $0xf0] sm:$0xff]
      %v423 = vmul.f32 %v407, 2.0
      %v424 = vmul.f32 %v408, 2.0
      %v425 = vmul.f32 %v409, 2.0
      %v426 = vmul.f32 %v410, 2.0
      %v427 = vmul.f32 %v411, 2.0
      %v428 = vmul.f32 %v412, 2.0
      %v429 = vmul.f32 %v413, 2.0
      %v430 = vmul.f32 %v414, 2.0
      %v431 = vmul.f32 %v415, 2.0
      %v432 = vmul.f32 %v416, 2.0
      %v433 = vmul.f32 %v417, 2.0
      %v434 = vmul.f32 %v418, 2.0
      %v435 = vmul.f32 %v419, 2.0
      %v436 = vmul.f32 %v420, 2.0
      %v437 = vmul.f32 %v421, 2.0
      %v438 = vmul.f32 %v422, 2.0
      %v439 = vsub.f32 %v423, %v375
      %v440 = vsub.f32 %v424, %v377
      %v441 = vsub.f32 %v425, %v379
      %v442 = vsub.f32 %v426, %v381
      %v443 = vsub.f32 %v427, %v383
      %v444 = vsub.f32 %v428, %v385
      %v445 = vsub.f32 %v429, %v387
      %v446 = vsub.f32 %v430, %v389
      %v447 = vsub.f32 %v431, %v391
      %v448 = vsub.f32 %v432, %v393
      %v449 = vsub.f32 %v433, %v395
      %v450 = vsub.f32 %v434, %v397
      %v451 = vsub.f32 %v435, %v399
      %v452 = vsub.f32 %v436, %v401
      %v453 = vsub.f32 %v437, %v403
      %v454 = vsub.f32 %v438, %v405
      %s455 = sld [smem:[#allocation3 + $0x1]]
      %v456 = vstv %s455
      %v457 = vmul.f32 %v456, %v439
      %v458 = vmul.f32 %v456, %v440
      %v459 = vmul.f32 %v456, %v441
      %v460 = vmul.f32 %v456, %v442
      %v461 = vmul.f32 %v456, %v443
      %v462 = vmul.f32 %v456, %v444
      %v463 = vmul.f32 %v456, %v445
      %v464 = vmul.f32 %v456, %v446
      %v465 = vmul.f32 %v456, %v447
      %v466 = vmul.f32 %v456, %v448
      %v467 = vmul.f32 %v456, %v449
      %v468 = vmul.f32 %v456, %v450
      %v469 = vmul.f32 %v456, %v451
      %v470 = vmul.f32 %v456, %v452
      %v471 = vmul.f32 %v456, %v453
      %v472 = vmul.f32 %v456, %v454
      %v473 = vadd.f32 %v376, %v457
      %v474 = vadd.f32 %v378, %v458
      %v475 = vadd.f32 %v380, %v459
      %v476 = vadd.f32 %v382, %v460
      %v477 = vadd.f32 %v384, %v461
      %v478 = vadd.f32 %v386, %v462
      %v479 = vadd.f32 %v388, %v463
      %v480 = vadd.f32 %v390, %v464
      %v481 = vadd.f32 %v392, %v465
      %v482 = vadd.f32 %v394, %v466
      %v483 = vadd.f32 %v396, %v467
      %v484 = vadd.f32 %v398, %v468
      %v485 = vadd.f32 %v400, %v469
      %v486 = vadd.f32 %v402, %v470
      %v487 = vadd.f32 %v404, %v471
      %v488 = vadd.f32 %v406, %v472
      %489 = vst [vmem:[%s4] sm:$0xff] %v439
      %490 = vst [vmem:[%s4 + $0x10] sm:$0xff] %v440
      %491 = vst [vmem:[%s4 + $0x20] sm:$0xff] %v441
      %492 = vst [vmem:[%s4 + $0x30] sm:$0xff] %v442
      %493 = vst [vmem:[%s4 + $0x40] sm:$0xff] %v443
      %494 = vst [vmem:[%s4 + $0x50] sm:$0xff] %v444
      %495 = vst [vmem:[%s4 + $0x60] sm:$0xff] %v445
      %496 = vst [vmem:[%s4 + $0x70] sm:$0xff] %v446
      %497 = vst [vmem:[%s4 + $0x80] sm:$0xff] %v447
      %498 = vst [vmem:[%s4 + $0x90] sm:$0xff] %v448
      %499 = vst [vmem:[%s4 + $0xa0] sm:$0xff] %v449
      %500 = vst [vmem:[%s4 + $0xb0] sm:$0xff] %v450
      %501 = vst [vmem:[%s4 + $0xc0] sm:$0xff] %v451
      %502 = vst [vmem:[%s4 + $0xd0] sm:$0xff] %v452
      %503 = vst [vmem:[%s4 + $0xe0] sm:$0xff] %v453
      %504 = vst [vmem:[%s4 + $0xf0] sm:$0xff] %v454
      %505 = vst [vmem:[%s4 + $0x8] sm:$0xff] %v473
      %506 = vst [vmem:[%s4 + $0x18] sm:$0xff] %v474
      %507 = vst [vmem:[%s4 + $0x28] sm:$0xff] %v475
      %508 = vst [vmem:[%s4 + $0x38] sm:$0xff] %v476
      %509 = vst [vmem:[%s4 + $0x48] sm:$0xff] %v477
      %510 = vst [vmem:[%s4 + $0x58] sm:$0xff] %v478
      %511 = vst [vmem:[%s4 + $0x68] sm:$0xff] %v479
      %512 = vst [vmem:[%s4 + $0x78] sm:$0xff] %v480
      %513 = vst [vmem:[%s4 + $0x88] sm:$0xff] %v481
      %514 = vst [vmem:[%s4 + $0x98] sm:$0xff] %v482
      %515 = vst [vmem:[%s4 + $0xa8] sm:$0xff] %v483
      %516 = vst [vmem:[%s4 + $0xb8] sm:$0xff] %v484
      %517 = vst [vmem:[%s4 + $0xc8] sm:$0xff] %v485
      %518 = vst [vmem:[%s4 + $0xd8] sm:$0xff] %v486
      %519 = vst [vmem:[%s4 + $0xe8] sm:$0xff] %v487
      %520 = vst [vmem:[%s4 + $0xf8] sm:$0xff] %v488
    $region29: #{bernnet_forward.6} parent=1 // pred_fallthru
      _
    // Predicated region
    $region30: #{bernnet_forward.6} parent=1 // pred_check
      _
    $region31: #{bernnet_forward.6} parent=1 // pred_check_branch
      %522 = sbr.rel (0) target = $region33
    $region32: #{bernnet_forward.6} parent=1 // pred_region
      _
    $region33: #{bernnet_forward.6} parent=1 // pred_fallthru
      _
    // Predicated region
    $region34: #{bernnet_forward.6} parent=1 // pred_check
      _
    $region35: #{bernnet_forward.6} parent=1 // pred_check_branch
      %524 = sbr.rel (0) target = $region37
    $region36: #{bernnet_forward.6} parent=1 // pred_region
      _
    $region37: #{bernnet_forward.6} parent=1 // pred_fallthru
      _
    %525 = vsyncpa [#allocation4], 1

// kernel: bernnet_forward.7
$region0: #{bernnet_forward.7}
  #allocation0 [shape = 'u32[]', space=smem, size = 0x4, offset = 0x4, fixed_abs, tag = 'smem constant byte address 0x4 - core index']
  #allocation1 [shape = 'u32[72,128]{1,0:T(1,128)}', space=vmem, size = 0x9000, scoped, tag = 'internal scratch']
  #allocation2 [shape = 'f32[128,256]{1,0:T(8,128)}', space=vmem, size = 0x20000, scoped, tag = 'scratch operand']
  %s0 = inlined_call_operand.vmem [shape: f32[4], index: 0, kind: input, shape index: {}]
  %s1 = inlined_call_operand.vmem [shape: bf16[128,128], index: 1, kind: input, shape index: {}]
  %s2 = inlined_call_operand.vmem [shape: f32[128,256], index: 2, kind: input, shape index: {}, may-alias: {2,3}]
  %s3 = inlined_call_operand.vmem [shape: f32[128,256], index: 3, kind: input, shape index: {}, may-alias: {2,3}]
  %s4 = inlined_call_operand.vmem [shape: f32[128,128], index: 4, kind: output, shape index: {}]
  %s5 = sld [smem:[#allocation0]]
  $region38: #{bernnet_forward.7} parent=0
    _
  %s7 = ssub.s32 1, %s5
  %s8 = scalar_select 0, %s7, %s5
  $region1: #{bernnet_forward.7} parent=0
    #allocation3 [shape = 'u8[512]{0}', space=smem, size = 0x200, scoped, tag = 'input window, operand 0, single buffered']
    #allocation4 [shape = 's32[1]{0}', space=sflag, size = 0x4, scoped, tag = 'scoped memory for bernnet_forward.7']
    %9 = vsyncpa [#allocation4], 0
    // Predicated region
    $region2: #{bernnet_forward.7} parent=1 // pred_check
      _
    $region3: #{bernnet_forward.7} parent=1 // pred_check_branch
      %11 = sbr.rel (0) target = $region5
    $region4: #{bernnet_forward.7} parent=1 // pred_region
      %13 = vsyncadd [#allocation4], 0
      %s15 = sshll.u32 %s0, 4
      %s16 = int_to_ptr.vmem [resolvable:$true] %s15
      %18 = dma.vmem_to_smem %s16, 16, [#allocation3], [#allocation4]
    $region5: #{bernnet_forward.7} parent=1 // pred_fallthru
      _
    // Predicated region
    $region6: #{bernnet_forward.7} parent=1 // pred_check
      _
    $region7: #{bernnet_forward.7} parent=1 // pred_check_branch
      %20 = sbr.rel (0) target = $region9
    $region8: #{bernnet_forward.7} parent=1 // pred_region
      _
    $region9: #{bernnet_forward.7} parent=1 // pred_fallthru
      _
    // Predicated region
    $region10: #{bernnet_forward.7} parent=1 // pred_check
      _
    $region11: #{bernnet_forward.7} parent=1 // pred_check_branch
      %22 = sbr.rel (0) target = $region13
    $region12: #{bernnet_forward.7} parent=1 // pred_region
      _
    $region13: #{bernnet_forward.7} parent=1 // pred_fallthru
      _
    // Predicated region
    $region14: #{bernnet_forward.7} parent=1 // pred_check
      _
    $region15: #{bernnet_forward.7} parent=1 // pred_check_branch
      %24 = sbr.rel (0) target = $region17
    $region16: #{bernnet_forward.7} parent=1 // pred_region
      _
    $region17: #{bernnet_forward.7} parent=1 // pred_fallthru
      _
    // Predicated region
    $region18: #{bernnet_forward.7} parent=1 // pred_check
      _
    $region19: #{bernnet_forward.7} parent=1 // pred_check_branch
      %26 = sbr.rel (0) target = $region21
    $region20: #{bernnet_forward.7} parent=1 // pred_region
      %28 = dma.done [#allocation4], 16
    $region21: #{bernnet_forward.7} parent=1 // pred_fallthru
      _
    %29 = sfence
    %p30 = scmp.eq.s32.totalorder 0, 0
    // Predicated region
    $region22: #{bernnet_forward.7} parent=1 // pred_check
      %p31 = pneg %p30
    $region23: #{bernnet_forward.7} parent=1 // pred_check_branch
      %33 = sbr.rel (%p31) target = $region25
    $region24: #{bernnet_forward.7} parent=1 // pred_region
      %34 = vst [vmem:[#allocation2] sm:$0xff] 0.0
      %35 = vst [vmem:[#allocation2 + $0x8] sm:$0xff] 0.0
      %36 = vst [vmem:[#allocation2 + $0x10] sm:$0xff] 0.0
      %37 = vst [vmem:[#allocation2 + $0x18] sm:$0xff] 0.0
      %38 = vst [vmem:[#allocation2 + $0x20] sm:$0xff] 0.0
      %39 = vst [vmem:[#allocation2 + $0x28] sm:$0xff] 0.0
      %40 = vst [vmem:[#allocation2 + $0x30] sm:$0xff] 0.0
      %41 = vst [vmem:[#allocation2 + $0x38] sm:$0xff] 0.0
      %42 = vst [vmem:[#allocation2 + $0x40] sm:$0xff] 0.0
      %43 = vst [vmem:[#allocation2 + $0x48] sm:$0xff] 0.0
      %44 = vst [vmem:[#allocation2 + $0x50] sm:$0xff] 0.0
      %45 = vst [vmem:[#allocation2 + $0x58] sm:$0xff] 0.0
      %46 = vst [vmem:[#allocation2 + $0x60] sm:$0xff] 0.0
      %47 = vst [vmem:[#allocation2 + $0x68] sm:$0xff] 0.0
      %48 = vst [vmem:[#allocation2 + $0x70] sm:$0xff] 0.0
      %49 = vst [vmem:[#allocation2 + $0x78] sm:$0xff] 0.0
      %50 = vst [vmem:[#allocation2 + $0x80] sm:$0xff] 0.0
      %51 = vst [vmem:[#allocation2 + $0x88] sm:$0xff] 0.0
      %52 = vst [vmem:[#allocation2 + $0x90] sm:$0xff] 0.0
      %53 = vst [vmem:[#allocation2 + $0x98] sm:$0xff] 0.0
      %54 = vst [vmem:[#allocation2 + $0xa0] sm:$0xff] 0.0
      %55 = vst [vmem:[#allocation2 + $0xa8] sm:$0xff] 0.0
      %56 = vst [vmem:[#allocation2 + $0xb0] sm:$0xff] 0.0
      %57 = vst [vmem:[#allocation2 + $0xb8] sm:$0xff] 0.0
      %58 = vst [vmem:[#allocation2 + $0xc0] sm:$0xff] 0.0
      %59 = vst [vmem:[#allocation2 + $0xc8] sm:$0xff] 0.0
      %60 = vst [vmem:[#allocation2 + $0xd0] sm:$0xff] 0.0
      %61 = vst [vmem:[#allocation2 + $0xd8] sm:$0xff] 0.0
      %62 = vst [vmem:[#allocation2 + $0xe0] sm:$0xff] 0.0
      %63 = vst [vmem:[#allocation2 + $0xe8] sm:$0xff] 0.0
      %64 = vst [vmem:[#allocation2 + $0xf0] sm:$0xff] 0.0
      %65 = vst [vmem:[#allocation2 + $0xf8] sm:$0xff] 0.0
    $region25: #{bernnet_forward.7} parent=1 // pred_fallthru
      _
    %v66 = vld [vmem:[#allocation2] sm:$0xff]
    %v67 = vld [vmem:[#allocation2 + $0x8] sm:$0xff]
    %v68 = vld [vmem:[#allocation2 + $0x10] sm:$0xff]
    %v69 = vld [vmem:[#allocation2 + $0x18] sm:$0xff]
    %v70 = vld [vmem:[#allocation2 + $0x20] sm:$0xff]
    %v71 = vld [vmem:[#allocation2 + $0x28] sm:$0xff]
    %v72 = vld [vmem:[#allocation2 + $0x30] sm:$0xff]
    %v73 = vld [vmem:[#allocation2 + $0x38] sm:$0xff]
    %v74 = vld [vmem:[#allocation2 + $0x40] sm:$0xff]
    %v75 = vld [vmem:[#allocation2 + $0x48] sm:$0xff]
    %v76 = vld [vmem:[#allocation2 + $0x50] sm:$0xff]
    %v77 = vld [vmem:[#allocation2 + $0x58] sm:$0xff]
    %v78 = vld [vmem:[#allocation2 + $0x60] sm:$0xff]
    %v79 = vld [vmem:[#allocation2 + $0x68] sm:$0xff]
    %v80 = vld [vmem:[#allocation2 + $0x70] sm:$0xff]
    %v81 = vld [vmem:[#allocation2 + $0x78] sm:$0xff]
    %v82 = vld [vmem:[#allocation2 + $0x80] sm:$0xff]
    %v83 = vld [vmem:[#allocation2 + $0x88] sm:$0xff]
    %v84 = vld [vmem:[#allocation2 + $0x90] sm:$0xff]
    %v85 = vld [vmem:[#allocation2 + $0x98] sm:$0xff]
    %v86 = vld [vmem:[#allocation2 + $0xa0] sm:$0xff]
    %v87 = vld [vmem:[#allocation2 + $0xa8] sm:$0xff]
    %v88 = vld [vmem:[#allocation2 + $0xb0] sm:$0xff]
    %v89 = vld [vmem:[#allocation2 + $0xb8] sm:$0xff]
    %v90 = vld [vmem:[#allocation2 + $0xc0] sm:$0xff]
    %v91 = vld [vmem:[#allocation2 + $0xc8] sm:$0xff]
    %v92 = vld [vmem:[#allocation2 + $0xd0] sm:$0xff]
    %v93 = vld [vmem:[#allocation2 + $0xd8] sm:$0xff]
    %v94 = vld [vmem:[#allocation2 + $0xe0] sm:$0xff]
    %v95 = vld [vmem:[#allocation2 + $0xe8] sm:$0xff]
    %v96 = vld [vmem:[#allocation2 + $0xf0] sm:$0xff]
    %v97 = vld [vmem:[#allocation2 + $0xf8] sm:$0xff]
    %v98 = vld [vmem:[%s1] sm:$0xf]
    %v99 = vld [vmem:[%s1 + $0x4] sm:$0xf]
    %v100 = vld [vmem:[%s1 + $0x8] sm:$0xf]
    %v101 = vld [vmem:[%s1 + $0xc] sm:$0xf]
    %v102 = vld [vmem:[%s1 + $0x10] sm:$0xf]
    %v103 = vld [vmem:[%s1 + $0x14] sm:$0xf]
    %v104 = vld [vmem:[%s1 + $0x18] sm:$0xf]
    %v105 = vld [vmem:[%s1 + $0x1c] sm:$0xf]
    %v106 = vld [vmem:[%s1 + $0x20] sm:$0xf]
    %v107 = vld [vmem:[%s1 + $0x24] sm:$0xf]
    %v108 = vld [vmem:[%s1 + $0x28] sm:$0xf]
    %v109 = vld [vmem:[%s1 + $0x2c] sm:$0xf]
    %v110 = vld [vmem:[%s1 + $0x30] sm:$0xf]
    %v111 = vld [vmem:[%s1 + $0x34] sm:$0xf]
    %v112 = vld [vmem:[%s1 + $0x38] sm:$0xf]
    %v113 = vld [vmem:[%s1 + $0x3c] sm:$0xf]
    %v114 = vld [vmem:[%s2] sm:$0xff]
    %v115 = vld [vmem:[%s2 + $0x8] sm:$0xff]
    %v116 = vld [vmem:[%s2 + $0x10] sm:$0xff]
    %v117 = vld [vmem:[%s2 + $0x18] sm:$0xff]
    %v118 = vld [vmem:[%s2 + $0x20] sm:$0xff]
    %v119 = vld [vmem:[%s2 + $0x28] sm:$0xff]
    %v120 = vld [vmem:[%s2 + $0x30] sm:$0xff]
    %v121 = vld [vmem:[%s2 + $0x38] sm:$0xff]
    %v122 = vld [vmem:[%s2 + $0x40] sm:$0xff]
    %v123 = vld [vmem:[%s2 + $0x48] sm:$0xff]
    %v124 = vld [vmem:[%s2 + $0x50] sm:$0xff]
    %v125 = vld [vmem:[%s2 + $0x58] sm:$0xff]
    %v126 = vld [vmem:[%s2 + $0x60] sm:$0xff]
    %v127 = vld [vmem:[%s2 + $0x68] sm:$0xff]
    %v128 = vld [vmem:[%s2 + $0x70] sm:$0xff]
    %v129 = vld [vmem:[%s2 + $0x78] sm:$0xff]
    %v130 = vld [vmem:[%s2 + $0x80] sm:$0xff]
    %v131 = vld [vmem:[%s2 + $0x88] sm:$0xff]
    %v132 = vld [vmem:[%s2 + $0x90] sm:$0xff]
    %v133 = vld [vmem:[%s2 + $0x98] sm:$0xff]
    %v134 = vld [vmem:[%s2 + $0xa0] sm:$0xff]
    %v135 = vld [vmem:[%s2 + $0xa8] sm:$0xff]
    %v136 = vld [vmem:[%s2 + $0xb0] sm:$0xff]
    %v137 = vld [vmem:[%s2 + $0xb8] sm:$0xff]
    %v138 = vld [vmem:[%s2 + $0xc0] sm:$0xff]
    %v139 = vld [vmem:[%s2 + $0xc8] sm:$0xff]
    %v140 = vld [vmem:[%s2 + $0xd0] sm:$0xff]
    %v141 = vld [vmem:[%s2 + $0xd8] sm:$0xff]
    %v142 = vld [vmem:[%s2 + $0xe0] sm:$0xff]
    %v143 = vld [vmem:[%s2 + $0xe8] sm:$0xff]
    %v144 = vld [vmem:[%s2 + $0xf0] sm:$0xff]
    %v145 = vld [vmem:[%s2 + $0xf8] sm:$0xff]
    %v146 = vpack.c.bf16 %v116, %v114
    %v147 = vpack.c.bf16 %v117, %v115
    %v148 = vpack.c.bf16 %v120, %v118
    %v149 = vpack.c.bf16 %v121, %v119
    %v150 = vpack.c.bf16 %v124, %v122
    %v151 = vpack.c.bf16 %v125, %v123
    %v152 = vpack.c.bf16 %v128, %v126
    %v153 = vpack.c.bf16 %v129, %v127
    %v154 = vpack.c.bf16 %v132, %v130
    %v155 = vpack.c.bf16 %v133, %v131
    %v156 = vpack.c.bf16 %v136, %v134
    %v157 = vpack.c.bf16 %v137, %v135
    %v158 = vpack.c.bf16 %v140, %v138
    %v159 = vpack.c.bf16 %v141, %v139
    %v160 = vpack.c.bf16 %v144, %v142
    %v161 = vpack.c.bf16 %v145, %v143
    %v178 = vunpack.c.l.b16 %v98
    %v179 = vunpack.c.l.b16 %v99
    %v180 = vunpack.c.l.b16 %v100
    %v181 = vunpack.c.l.b16 %v101
    %v182 = vunpack.c.l.b16 %v102
    %v183 = vunpack.c.l.b16 %v103
    %v184 = vunpack.c.l.b16 %v104
    %v185 = vunpack.c.l.b16 %v105
    %v186 = vunpack.c.l.b16 %v106
    %v187 = vunpack.c.l.b16 %v107
    %v188 = vunpack.c.l.b16 %v108
    %v189 = vunpack.c.l.b16 %v109
    %v190 = vunpack.c.l.b16 %v110
    %v191 = vunpack.c.l.b16 %v111
    %v192 = vunpack.c.l.b16 %v112
    %v193 = vunpack.c.l.b16 %v113
    %v194 = vpack.c.b16 %v179, %v178
    %v195 = vpack.c.b16 %v181, %v180
    %v196 = vpack.c.b16 %v183, %v182
    %v197 = vpack.c.b16 %v185, %v184
    %v198 = vpack.c.b16 %v187, %v186
    %v199 = vpack.c.b16 %v189, %v188
    %v200 = vpack.c.b16 %v191, %v190
    %v201 = vpack.c.b16 %v193, %v192
    %210 = vmatpush.bf16.msra.mxu0 %v160
    %211 = vmatpush.bf16.msra.mxu0 %v158
    %212 = vmatpush.bf16.msra.mxu0 %v156
    %213 = vmatpush.bf16.msra.mxu0 %v154
    %214 = vmatpush.bf16.msra.mxu0 %v152
    %215 = vmatpush.bf16.msra.mxu0 %v150
    %216 = vmatpush.bf16.msra.mxu0 %v148
    %217 = vmatpush.bf16.msra.mxu0 %v146
    %218 = vmatmul.bf16.gmra.mxu0 %v194
    %v219 = vpop.f32.mrf.mxu0
    %v220 = vadd.f32 0.0, %v219
    %v221 = vpop.f32.mrf.mxu0
    %v222 = vadd.f32 0.0, %v221
    %223 = vmatmul.bf16.gmra.mxu0 %v195
    %v224 = vpop.f32.mrf.mxu0
    %v225 = vadd.f32 0.0, %v224
    %v226 = vpop.f32.mrf.mxu0
    %v227 = vadd.f32 0.0, %v226
    %228 = vmatmul.bf16.gmra.mxu0 %v196
    %v229 = vpop.f32.mrf.mxu0
    %v230 = vadd.f32 0.0, %v229
    %v231 = vpop.f32.mrf.mxu0
    %v232 = vadd.f32 0.0, %v231
    %233 = vmatmul.bf16.gmra.mxu0 %v197
    %v234 = vpop.f32.mrf.mxu0
    %v235 = vadd.f32 0.0, %v234
    %v236 = vpop.f32.mrf.mxu0
    %v237 = vadd.f32 0.0, %v236
    %238 = vmatmul.bf16.gmra.mxu0 %v198
    %v239 = vpop.f32.mrf.mxu0
    %v240 = vadd.f32 0.0, %v239
    %v241 = vpop.f32.mrf.mxu0
    %v242 = vadd.f32 0.0, %v241
    %243 = vmatmul.bf16.gmra.mxu0 %v199
    %v244 = vpop.f32.mrf.mxu0
    %v245 = vadd.f32 0.0, %v244
    %v246 = vpop.f32.mrf.mxu0
    %v247 = vadd.f32 0.0, %v246
    %248 = vmatmul.bf16.gmra.mxu0 %v200
    %v249 = vpop.f32.mrf.mxu0
    %v250 = vadd.f32 0.0, %v249
    %v251 = vpop.f32.mrf.mxu0
    %v252 = vadd.f32 0.0, %v251
    %253 = vmatmul.bf16.gmra.mxu0 %v201
    %v254 = vpop.f32.mrf.mxu0
    %v255 = vadd.f32 0.0, %v254
    %v256 = vpop.f32.mrf.mxu0
    %v257 = vadd.f32 0.0, %v256
    %258 = vdwg.mxu0
    %259 = vmatpush.bf16.msra.mxu0 %v161
    %260 = vmatpush.bf16.msra.mxu0 %v159
    %261 = vmatpush.bf16.msra.mxu0 %v157
    %262 = vmatpush.bf16.msra.mxu0 %v155
    %263 = vmatpush.bf16.msra.mxu0 %v153
    %264 = vmatpush.bf16.msra.mxu0 %v151
    %265 = vmatpush.bf16.msra.mxu0 %v149
    %266 = vmatpush.bf16.msra.mxu0 %v147
    %267 = vmatmul.bf16.gmra.mxu0 %v194
    %v268 = vpop.f32.mrf.mxu0
    %v269 = vadd.f32 0.0, %v268
    %v270 = vpop.f32.mrf.mxu0
    %v271 = vadd.f32 0.0, %v270
    %272 = vmatmul.bf16.gmra.mxu0 %v195
    %v273 = vpop.f32.mrf.mxu0
    %v274 = vadd.f32 0.0, %v273
    %v275 = vpop.f32.mrf.mxu0
    %v276 = vadd.f32 0.0, %v275
    %277 = vmatmul.bf16.gmra.mxu0 %v196
    %v278 = vpop.f32.mrf.mxu0
    %v279 = vadd.f32 0.0, %v278
    %v280 = vpop.f32.mrf.mxu0
    %v281 = vadd.f32 0.0, %v280
    %282 = vmatmul.bf16.gmra.mxu0 %v197
    %v283 = vpop.f32.mrf.mxu0
    %v284 = vadd.f32 0.0, %v283
    %v285 = vpop.f32.mrf.mxu0
    %v286 = vadd.f32 0.0, %v285
    %287 = vmatmul.bf16.gmra.mxu0 %v198
    %v288 = vpop.f32.mrf.mxu0
    %v289 = vadd.f32 0.0, %v288
    %v290 = vpop.f32.mrf.mxu0
    %v291 = vadd.f32 0.0, %v290
    %292 = vmatmul.bf16.gmra.mxu0 %v199
    %v293 = vpop.f32.mrf.mxu0
    %v294 = vadd.f32 0.0, %v293
    %v295 = vpop.f32.mrf.mxu0
    %v296 = vadd.f32 0.0, %v295
    %297 = vmatmul.bf16.gmra.mxu0 %v200
    %v298 = vpop.f32.mrf.mxu0
    %v299 = vadd.f32 0.0, %v298
    %v300 = vpop.f32.mrf.mxu0
    %v301 = vadd.f32 0.0, %v300
    %302 = vmatmul.bf16.gmra.mxu0 %v201
    %v303 = vpop.f32.mrf.mxu0
    %v304 = vadd.f32 0.0, %v303
    %v305 = vpop.f32.mrf.mxu0
    %v306 = vadd.f32 0.0, %v305
    %307 = vdwg.mxu0
    %v308 = vadd.f32 %v66, %v220
    %v309 = vadd.f32 %v67, %v269
    %v310 = vadd.f32 %v68, %v222
    %v311 = vadd.f32 %v69, %v271
    %v312 = vadd.f32 %v70, %v225
    %v313 = vadd.f32 %v71, %v274
    %v314 = vadd.f32 %v72, %v227
    %v315 = vadd.f32 %v73, %v276
    %v316 = vadd.f32 %v74, %v230
    %v317 = vadd.f32 %v75, %v279
    %v318 = vadd.f32 %v76, %v232
    %v319 = vadd.f32 %v77, %v281
    %v320 = vadd.f32 %v78, %v235
    %v321 = vadd.f32 %v79, %v284
    %v322 = vadd.f32 %v80, %v237
    %v323 = vadd.f32 %v81, %v286
    %v324 = vadd.f32 %v82, %v240
    %v325 = vadd.f32 %v83, %v289
    %v326 = vadd.f32 %v84, %v242
    %v327 = vadd.f32 %v85, %v291
    %v328 = vadd.f32 %v86, %v245
    %v329 = vadd.f32 %v87, %v294
    %v330 = vadd.f32 %v88, %v247
    %v331 = vadd.f32 %v89, %v296
    %v332 = vadd.f32 %v90, %v250
    %v333 = vadd.f32 %v91, %v299
    %v334 = vadd.f32 %v92, %v252
    %v335 = vadd.f32 %v93, %v301
    %v336 = vadd.f32 %v94, %v255
    %v337 = vadd.f32 %v95, %v304
    %v338 = vadd.f32 %v96, %v257
    %v339 = vadd.f32 %v97, %v306
    %340 = vst [vmem:[#allocation2] sm:$0xff] %v308
    %341 = vst [vmem:[#allocation2 + $0x8] sm:$0xff] %v309
    %342 = vst [vmem:[#allocation2 + $0x10] sm:$0xff] %v310
    %343 = vst [vmem:[#allocation2 + $0x18] sm:$0xff] %v311
    %344 = vst [vmem:[#allocation2 + $0x20] sm:$0xff] %v312
    %345 = vst [vmem:[#allocation2 + $0x28] sm:$0xff] %v313
    %346 = vst [vmem:[#allocation2 + $0x30] sm:$0xff] %v314
    %347 = vst [vmem:[#allocation2 + $0x38] sm:$0xff] %v315
    %348 = vst [vmem:[#allocation2 + $0x40] sm:$0xff] %v316
    %349 = vst [vmem:[#allocation2 + $0x48] sm:$0xff] %v317
    %350 = vst [vmem:[#allocation2 + $0x50] sm:$0xff] %v318
    %351 = vst [vmem:[#allocation2 + $0x58] sm:$0xff] %v319
    %352 = vst [vmem:[#allocation2 + $0x60] sm:$0xff] %v320
    %353 = vst [vmem:[#allocation2 + $0x68] sm:$0xff] %v321
    %354 = vst [vmem:[#allocation2 + $0x70] sm:$0xff] %v322
    %355 = vst [vmem:[#allocation2 + $0x78] sm:$0xff] %v323
    %356 = vst [vmem:[#allocation2 + $0x80] sm:$0xff] %v324
    %357 = vst [vmem:[#allocation2 + $0x88] sm:$0xff] %v325
    %358 = vst [vmem:[#allocation2 + $0x90] sm:$0xff] %v326
    %359 = vst [vmem:[#allocation2 + $0x98] sm:$0xff] %v327
    %360 = vst [vmem:[#allocation2 + $0xa0] sm:$0xff] %v328
    %361 = vst [vmem:[#allocation2 + $0xa8] sm:$0xff] %v329
    %362 = vst [vmem:[#allocation2 + $0xb0] sm:$0xff] %v330
    %363 = vst [vmem:[#allocation2 + $0xb8] sm:$0xff] %v331
    %364 = vst [vmem:[#allocation2 + $0xc0] sm:$0xff] %v332
    %365 = vst [vmem:[#allocation2 + $0xc8] sm:$0xff] %v333
    %366 = vst [vmem:[#allocation2 + $0xd0] sm:$0xff] %v334
    %367 = vst [vmem:[#allocation2 + $0xd8] sm:$0xff] %v335
    %368 = vst [vmem:[#allocation2 + $0xe0] sm:$0xff] %v336
    %369 = vst [vmem:[#allocation2 + $0xe8] sm:$0xff] %v337
    %370 = vst [vmem:[#allocation2 + $0xf0] sm:$0xff] %v338
    %371 = vst [vmem:[#allocation2 + $0xf8] sm:$0xff] %v339
    // Predicated region
    $region26: #{bernnet_forward.7} parent=1 // pred_check
      %p372 = pneg %p30
    $region27: #{bernnet_forward.7} parent=1 // pred_check_branch
      %374 = sbr.rel (%p372) target = $region29
    $region28: #{bernnet_forward.7} parent=1 // pred_region
      %v375 = vld [vmem:[#allocation2] sm:$0xff]
      %v376 = vld [vmem:[#allocation2 + $0x8] sm:$0xff]
      %v377 = vld [vmem:[#allocation2 + $0x10] sm:$0xff]
      %v378 = vld [vmem:[#allocation2 + $0x18] sm:$0xff]
      %v379 = vld [vmem:[#allocation2 + $0x20] sm:$0xff]
      %v380 = vld [vmem:[#allocation2 + $0x28] sm:$0xff]
      %v381 = vld [vmem:[#allocation2 + $0x30] sm:$0xff]
      %v382 = vld [vmem:[#allocation2 + $0x38] sm:$0xff]
      %v383 = vld [vmem:[#allocation2 + $0x40] sm:$0xff]
      %v384 = vld [vmem:[#allocation2 + $0x48] sm:$0xff]
      %v385 = vld [vmem:[#allocation2 + $0x50] sm:$0xff]
      %v386 = vld [vmem:[#allocation2 + $0x58] sm:$0xff]
      %v387 = vld [vmem:[#allocation2 + $0x60] sm:$0xff]
      %v388 = vld [vmem:[#allocation2 + $0x68] sm:$0xff]
      %v389 = vld [vmem:[#allocation2 + $0x70] sm:$0xff]
      %v390 = vld [vmem:[#allocation2 + $0x78] sm:$0xff]
      %v391 = vld [vmem:[#allocation2 + $0x80] sm:$0xff]
      %v392 = vld [vmem:[#allocation2 + $0x88] sm:$0xff]
      %v393 = vld [vmem:[#allocation2 + $0x90] sm:$0xff]
      %v394 = vld [vmem:[#allocation2 + $0x98] sm:$0xff]
      %v395 = vld [vmem:[#allocation2 + $0xa0] sm:$0xff]
      %v396 = vld [vmem:[#allocation2 + $0xa8] sm:$0xff]
      %v397 = vld [vmem:[#allocation2 + $0xb0] sm:$0xff]
      %v398 = vld [vmem:[#allocation2 + $0xb8] sm:$0xff]
      %v399 = vld [vmem:[#allocation2 + $0xc0] sm:$0xff]
      %v400 = vld [vmem:[#allocation2 + $0xc8] sm:$0xff]
      %v401 = vld [vmem:[#allocation2 + $0xd0] sm:$0xff]
      %v402 = vld [vmem:[#allocation2 + $0xd8] sm:$0xff]
      %v403 = vld [vmem:[#allocation2 + $0xe0] sm:$0xff]
      %v404 = vld [vmem:[#allocation2 + $0xe8] sm:$0xff]
      %v405 = vld [vmem:[#allocation2 + $0xf0] sm:$0xff]
      %v406 = vld [vmem:[#allocation2 + $0xf8] sm:$0xff]
      %v407 = vld [vmem:[%s3] sm:$0xff]
      %v408 = vld [vmem:[%s3 + $0x10] sm:$0xff]
      %v409 = vld [vmem:[%s3 + $0x20] sm:$0xff]
      %v410 = vld [vmem:[%s3 + $0x30] sm:$0xff]
      %v411 = vld [vmem:[%s3 + $0x40] sm:$0xff]
      %v412 = vld [vmem:[%s3 + $0x50] sm:$0xff]
      %v413 = vld [vmem:[%s3 + $0x60] sm:$0xff]
      %v414 = vld [vmem:[%s3 + $0x70] sm:$0xff]
      %v415 = vld [vmem:[%s3 + $0x80] sm:$0xff]
      %v416 = vld [vmem:[%s3 + $0x90] sm:$0xff]
      %v417 = vld [vmem:[%s3 + $0xa0] sm:$0xff]
      %v418 = vld [vmem:[%s3 + $0xb0] sm:$0xff]
      %v419 = vld [vmem:[%s3 + $0xc0] sm:$0xff]
      %v420 = vld [vmem:[%s3 + $0xd0] sm:$0xff]
      %v421 = vld [vmem:[%s3 + $0xe0] sm:$0xff]
      %v422 = vld [vmem:[%s3 + $0xf0] sm:$0xff]
      %v423 = vmul.f32 %v407, 2.0
      %v424 = vmul.f32 %v408, 2.0
      %v425 = vmul.f32 %v409, 2.0
      %v426 = vmul.f32 %v410, 2.0
      %v427 = vmul.f32 %v411, 2.0
      %v428 = vmul.f32 %v412, 2.0
      %v429 = vmul.f32 %v413, 2.0
      %v430 = vmul.f32 %v414, 2.0
      %v431 = vmul.f32 %v415, 2.0
      %v432 = vmul.f32 %v416, 2.0
      %v433 = vmul.f32 %v417, 2.0
      %v434 = vmul.f32 %v418, 2.0
      %v435 = vmul.f32 %v419, 2.0
      %v436 = vmul.f32 %v420, 2.0
      %v437 = vmul.f32 %v421, 2.0
      %v438 = vmul.f32 %v422, 2.0
      %v439 = vsub.f32 %v423, %v375
      %v440 = vsub.f32 %v424, %v377
      %v441 = vsub.f32 %v425, %v379
      %v442 = vsub.f32 %v426, %v381
      %v443 = vsub.f32 %v427, %v383
      %v444 = vsub.f32 %v428, %v385
      %v445 = vsub.f32 %v429, %v387
      %v446 = vsub.f32 %v430, %v389
      %v447 = vsub.f32 %v431, %v391
      %v448 = vsub.f32 %v432, %v393
      %v449 = vsub.f32 %v433, %v395
      %v450 = vsub.f32 %v434, %v397
      %v451 = vsub.f32 %v435, %v399
      %v452 = vsub.f32 %v436, %v401
      %v453 = vsub.f32 %v437, %v403
      %v454 = vsub.f32 %v438, %v405
      %s455 = sld [smem:[#allocation3]]
      %v456 = vstv %s455
      %v457 = vmul.f32 %v456, %v439
      %v458 = vmul.f32 %v456, %v440
      %v459 = vmul.f32 %v456, %v441
      %v460 = vmul.f32 %v456, %v442
      %v461 = vmul.f32 %v456, %v443
      %v462 = vmul.f32 %v456, %v444
      %v463 = vmul.f32 %v456, %v445
      %v464 = vmul.f32 %v456, %v446
      %v465 = vmul.f32 %v456, %v447
      %v466 = vmul.f32 %v456, %v448
      %v467 = vmul.f32 %v456, %v449
      %v468 = vmul.f32 %v456, %v450
      %v469 = vmul.f32 %v456, %v451
      %v470 = vmul.f32 %v456, %v452
      %v471 = vmul.f32 %v456, %v453
      %v472 = vmul.f32 %v456, %v454
      %v473 = vadd.f32 %v376, %v457
      %v474 = vadd.f32 %v378, %v458
      %v475 = vadd.f32 %v380, %v459
      %v476 = vadd.f32 %v382, %v460
      %v477 = vadd.f32 %v384, %v461
      %v478 = vadd.f32 %v386, %v462
      %v479 = vadd.f32 %v388, %v463
      %v480 = vadd.f32 %v390, %v464
      %v481 = vadd.f32 %v392, %v465
      %v482 = vadd.f32 %v394, %v466
      %v483 = vadd.f32 %v396, %v467
      %v484 = vadd.f32 %v398, %v468
      %v485 = vadd.f32 %v400, %v469
      %v486 = vadd.f32 %v402, %v470
      %v487 = vadd.f32 %v404, %v471
      %v488 = vadd.f32 %v406, %v472
      %v489 = vlaneseq
      %v490 = vand.u32 %v489, 127
      %vm491 = vcmp.lt.s32.totalorder %v490, 4
      %v492 = vsel %vm491, %v473, -inf
      %v493 = vsel %vm491, %v474, -inf
      %v494 = vsel %vm491, %v475, -inf
      %v495 = vsel %vm491, %v476, -inf
      %v496 = vsel %vm491, %v477, -inf
      %v497 = vsel %vm491, %v478, -inf
      %v498 = vsel %vm491, %v479, -inf
      %v499 = vsel %vm491, %v480, -inf
      %v500 = vsel %vm491, %v481, -inf
      %v501 = vsel %vm491, %v482, -inf
      %v502 = vsel %vm491, %v483, -inf
      %v503 = vsel %vm491, %v484, -inf
      %v504 = vsel %vm491, %v485, -inf
      %v505 = vsel %vm491, %v486, -inf
      %v506 = vsel %vm491, %v487, -inf
      %v507 = vsel %vm491, %v488, -inf
      %508 = vmax.xlane.f32.xlu0 %v492
      %v509 = vpop.xlane.xlu0 %508
      %510 = vmax.xlane.f32.xlu0 %v493
      %v511 = vpop.xlane.xlu0 %510
      %512 = vmax.xlane.f32.xlu0 %v494
      %v513 = vpop.xlane.xlu0 %512
      %514 = vmax.xlane.f32.xlu0 %v495
      %v515 = vpop.xlane.xlu0 %514
      %516 = vmax.xlane.f32.xlu0 %v496
      %v517 = vpop.xlane.xlu0 %516
      %518 = vmax.xlane.f32.xlu0 %v497
      %v519 = vpop.xlane.xlu0 %518
      %520 = vmax.xlane.f32.xlu0 %v498
      %v521 = vpop.xlane.xlu0 %520
      %522 = vmax.xlane.f32.xlu0 %v499
      %v523 = vpop.xlane.xlu0 %522
      %524 = vmax.xlane.f32.xlu0 %v500
      %v525 = vpop.xlane.xlu0 %524
      %526 = vmax.xlane.f32.xlu0 %v501
      %v527 = vpop.xlane.xlu0 %526
      %528 = vmax.xlane.f32.xlu0 %v502
      %v529 = vpop.xlane.xlu0 %528
      %530 = vmax.xlane.f32.xlu0 %v503
      %v531 = vpop.xlane.xlu0 %530
      %532 = vmax.xlane.f32.xlu0 %v504
      %v533 = vpop.xlane.xlu0 %532
      %534 = vmax.xlane.f32.xlu0 %v505
      %v535 = vpop.xlane.xlu0 %534
      %536 = vmax.xlane.f32.xlu0 %v506
      %v537 = vpop.xlane.xlu0 %536
      %538 = vmax.xlane.f32.xlu0 %v507
      %v539 = vpop.xlane.xlu0 %538
      %v540 = vsub.f32 %v492, %v509
      %v541 = vsub.f32 %v493, %v511
      %v542 = vsub.f32 %v494, %v513
      %v543 = vsub.f32 %v495, %v515
      %v544 = vsub.f32 %v496, %v517
      %v545 = vsub.f32 %v497, %v519
      %v546 = vsub.f32 %v498, %v521
      %v547 = vsub.f32 %v499, %v523
      %v548 = vsub.f32 %v500, %v525
      %v549 = vsub.f32 %v501, %v527
      %v550 = vsub.f32 %v502, %v529
      %v551 = vsub.f32 %v503, %v531
      %v552 = vsub.f32 %v504, %v533
      %v553 = vsub.f32 %v505, %v535
      %v554 = vsub.f32 %v506, %v537
      %v555 = vsub.f32 %v507, %v539
      %v556 = vmul.f32 %v540, 1.442695
      %v557 = vpow.pop %v556
      %v558 = vmul.f32 %v541, 1.442695
      %v559 = vpow.pop %v558
      %v560 = vmul.f32 %v542, 1.442695
      %v561 = vpow.pop %v560
      %v562 = vmul.f32 %v543, 1.442695
      %v563 = vpow.pop %v562
      %v564 = vmul.f32 %v544, 1.442695
      %v565 = vpow.pop %v564
      %v566 = vmul.f32 %v545, 1.442695
      %v567 = vpow.pop %v566
      %v568 = vmul.f32 %v546, 1.442695
      %v569 = vpow.pop %v568
      %v570 = vmul.f32 %v547, 1.442695
      %v571 = vpow.pop %v570
      %v572 = vmul.f32 %v548, 1.442695
      %v573 = vpow.pop %v572
      %v574 = vmul.f32 %v549, 1.442695
      %v575 = vpow.pop %v574
      %v576 = vmul.f32 %v550, 1.442695
      %v577 = vpow.pop %v576
      %v578 = vmul.f32 %v551, 1.442695
      %v579 = vpow.pop %v578
      %v580 = vmul.f32 %v552, 1.442695
      %v581 = vpow.pop %v580
      %v582 = vmul.f32 %v553, 1.442695
      %v583 = vpow.pop %v582
      %v584 = vmul.f32 %v554, 1.442695
      %v585 = vpow.pop %v584
      %v586 = vmul.f32 %v555, 1.442695
      %v587 = vpow.pop %v586
      %588 = vadd.xlane.f32.xlu0 %v557
      %v589 = vpop.xlane.xlu0 %588
      %590 = vadd.xlane.f32.xlu0 %v559
      %v591 = vpop.xlane.xlu0 %590
      %592 = vadd.xlane.f32.xlu0 %v561
      %v593 = vpop.xlane.xlu0 %592
      %594 = vadd.xlane.f32.xlu0 %v563
      %v595 = vpop.xlane.xlu0 %594
      %596 = vadd.xlane.f32.xlu0 %v565
      %v597 = vpop.xlane.xlu0 %596
      %598 = vadd.xlane.f32.xlu0 %v567
      %v599 = vpop.xlane.xlu0 %598
      %600 = vadd.xlane.f32.xlu0 %v569
      %v601 = vpop.xlane.xlu0 %600
      %602 = vadd.xlane.f32.xlu0 %v571
      %v603 = vpop.xlane.xlu0 %602
      %604 = vadd.xlane.f32.xlu0 %v573
      %v605 = vpop.xlane.xlu0 %604
      %606 = vadd.xlane.f32.xlu0 %v575
      %v607 = vpop.xlane.xlu0 %606
      %608 = vadd.xlane.f32.xlu0 %v577
      %v609 = vpop.xlane.xlu0 %608
      %610 = vadd.xlane.f32.xlu0 %v579
      %v611 = vpop.xlane.xlu0 %610
      %612 = vadd.xlane.f32.xlu0 %v581
      %v613 = vpop.xlane.xlu0 %612
      %614 = vadd.xlane.f32.xlu0 %v583
      %v615 = vpop.xlane.xlu0 %614
      %616 = vadd.xlane.f32.xlu0 %v585
      %v617 = vpop.xlane.xlu0 %616
      %618 = vadd.xlane.f32.xlu0 %v587
      %v619 = vpop.xlane.xlu0 %618
      %v620 = vlog2.pop %v589
      %v621 = vmul.f32 %v620, 0.6931472
      %v622 = vlog2.pop %v591
      %v623 = vmul.f32 %v622, 0.6931472
      %v624 = vlog2.pop %v593
      %v625 = vmul.f32 %v624, 0.6931472
      %v626 = vlog2.pop %v595
      %v627 = vmul.f32 %v626, 0.6931472
      %v628 = vlog2.pop %v597
      %v629 = vmul.f32 %v628, 0.6931472
      %v630 = vlog2.pop %v599
      %v631 = vmul.f32 %v630, 0.6931472
      %v632 = vlog2.pop %v601
      %v633 = vmul.f32 %v632, 0.6931472
      %v634 = vlog2.pop %v603
      %v635 = vmul.f32 %v634, 0.6931472
      %v636 = vlog2.pop %v605
      %v637 = vmul.f32 %v636, 0.6931472
      %v638 = vlog2.pop %v607
      %v639 = vmul.f32 %v638, 0.6931472
      %v640 = vlog2.pop %v609
      %v641 = vmul.f32 %v640, 0.6931472
      %v642 = vlog2.pop %v611
      %v643 = vmul.f32 %v642, 0.6931472
      %v644 = vlog2.pop %v613
      %v645 = vmul.f32 %v644, 0.6931472
      %v646 = vlog2.pop %v615
      %v647 = vmul.f32 %v646, 0.6931472
      %v648 = vlog2.pop %v617
      %v649 = vmul.f32 %v648, 0.6931472
      %v650 = vlog2.pop %v619
      %v651 = vmul.f32 %v650, 0.6931472
      %v652 = vsub.f32 %v540, %v621
      %v653 = vsub.f32 %v541, %v623
      %v654 = vsub.f32 %v542, %v625
      %v655 = vsub.f32 %v543, %v627
      %v656 = vsub.f32 %v544, %v629
      %v657 = vsub.f32 %v545, %v631
      %v658 = vsub.f32 %v546, %v633
      %v659 = vsub.f32 %v547, %v635
      %v660 = vsub.f32 %v548, %v637
      %v661 = vsub.f32 %v549, %v639
      %v662 = vsub.f32 %v550, %v641
      %v663 = vsub.f32 %v551, %v643
      %v664 = vsub.f32 %v552, %v645
      %v665 = vsub.f32 %v553, %v647
      %v666 = vsub.f32 %v554, %v649
      %v667 = vsub.f32 %v555, %v651
      %668 = vst [vmem:[%s4] sm:$0xff] %v652
      %669 = vst [vmem:[%s4 + $0x8] sm:$0xff] %v653
      %670 = vst [vmem:[%s4 + $0x10] sm:$0xff] %v654
      %671 = vst [vmem:[%s4 + $0x18] sm:$0xff] %v655
      %672 = vst [vmem:[%s4 + $0x20] sm:$0xff] %v656
      %673 = vst [vmem:[%s4 + $0x28] sm:$0xff] %v657
      %674 = vst [vmem:[%s4 + $0x30] sm:$0xff] %v658
      %675 = vst [vmem:[%s4 + $0x38] sm:$0xff] %v659
      %676 = vst [vmem:[%s4 + $0x40] sm:$0xff] %v660
      %677 = vst [vmem:[%s4 + $0x48] sm:$0xff] %v661
      %678 = vst [vmem:[%s4 + $0x50] sm:$0xff] %v662
      %679 = vst [vmem:[%s4 + $0x58] sm:$0xff] %v663
      %680 = vst [vmem:[%s4 + $0x60] sm:$0xff] %v664
      %681 = vst [vmem:[%s4 + $0x68] sm:$0xff] %v665
      %682 = vst [vmem:[%s4 + $0x70] sm:$0xff] %v666
      %683 = vst [vmem:[%s4 + $0x78] sm:$0xff] %v667
    $region29: #{bernnet_forward.7} parent=1 // pred_fallthru
      _
    // Predicated region
    $region30: #{bernnet_forward.7} parent=1 // pred_check
      _
    $region31: #{bernnet_forward.7} parent=1 // pred_check_branch
      %685 = sbr.rel (0) target = $region33
    $region32: #{bernnet_forward.7} parent=1 // pred_region
      _
    $region33: #{bernnet_forward.7} parent=1 // pred_fallthru
      _
    // Predicated region
    $region34: #{bernnet_forward.7} parent=1 // pred_check
      _
    $region35: #{bernnet_forward.7} parent=1 // pred_check_branch
      %687 = sbr.rel (0) target = $region37
    $region36: #{bernnet_forward.7} parent=1 // pred_region
      _
    $region37: #{bernnet_forward.7} parent=1 // pred_fallthru
      _
    %688 = vsyncpa [#allocation4], 1

</llo_original>
